<compile_context>
chip_gen: v6e
topology: v6e:2x2x1
jax: 0.10.0
libtpu: 0.0.40
codegen_flags: <defaults>
</compile_context>

<pallas_src>
import functools

import jax
import jax.numpy as jnp
from jax import lax
from jax.experimental import pallas as pl
from jax.experimental.pallas import tpu as pltpu

BN_EPS = 1e-5


def _resblock_kernel(x_ref, w1_ref, w2_ref, g1_ref, b1_ref, g2_ref, b2_ref,
                     o_ref, *, matmul_dtype):
    """Fused ResBlock1D forward.

    x_ref : (N, C, L)  PyTorch NCL layout, whole block in VMEM.
    w*_ref: (3C, C)    conv weights flattened so row (k*C + i) matches the
                       tap-stacked activation layout.
    g*/b* : (1, C)     BatchNorm affine params (gamma, beta).
    o_ref : (N, C, L)
    """
    n, c, l_len = x_ref.shape
    nl = n * l_len

    # ---- relayout once, in VMEM (no extra HBM round trip) ------------------
    # (N, C, L) -> (N, L, C) is a minor-most (XLU) transpose; merging (N, L)
    # into one row axis is a free leading-dim reshape.
    xt = jnp.transpose(x_ref[...], (0, 2, 1)).reshape(nl, c)       # (N*L, C)

    # Boundary masks for the zero-padded conv taps.  Rows are ordered
    # (n, l) -> n*L + l, so l == row mod L.  Masking also kills the
    # cross-batch rows that a circular roll would otherwise leak.
    row = lax.broadcasted_iota(jnp.int32, (nl, 1), 0)
    lpos = lax.rem(row, l_len)
    not_first = lpos > 0                    # valid positions for the x[l-1] tap
    not_last = lpos < (l_len - 1)           # valid positions for the x[l+1] tap

    def conv3(h, w_ref):
        # 1D conv (k=3, stride=1, pad=1, no bias) as a single MXU matmul.
        h_m1 = jnp.where(not_first, pltpu.roll(h, 1, 0), 0.0)        # h[l-1]
        h_p1 = jnp.where(not_last, pltpu.roll(h, nl - 1, 0), 0.0)    # h[l+1]
        taps = jnp.concatenate([h_m1, h, h_p1], axis=1)              # (N*L, 3C)
        return jnp.dot(taps.astype(matmul_dtype),
                       w_ref[...].astype(matmul_dtype),
                       preferred_element_type=jnp.float32)           # (N*L, C)

    def bn_fold(h, gamma, beta):
        # Training-mode BatchNorm folded into per-channel scale/shift.
        s = jnp.sum(h, axis=0, keepdims=True)                        # (1, C)
        ss = jnp.sum(h * h, axis=0, keepdims=True)                   # (1, C)
        inv_n = 1.0 / float(nl)
        mean = s * inv_n
        var = jnp.maximum(ss * inv_n - mean * mean, 0.0)             # clamp >= 0
        scale = gamma * lax.rsqrt(var + BN_EPS)
        shift = beta - mean * scale
        return scale, shift

    # ---- conv1 -> bn1 -> relu ----------------------------------------------
    h1 = conv3(xt, w1_ref)
    s1, t1 = bn_fold(h1, g1_ref[...], b1_ref[...])
    h1 = jnp.maximum(h1 * s1 + t1, 0.0)

    # ---- conv2 -> bn2 -> +identity -> relu  (stride=1, downsample=None) -----
    h2 = conv3(h1, w2_ref)
    s2, t2 = bn_fold(h2, g2_ref[...], b2_ref[...])
    out = jnp.maximum(h2 * s2 + t2 + xt, 0.0)

    # ---- relayout back to NCL and store (lane-dense: last dim = L) ----------
    o_ref[...] = jnp.transpose(out.reshape(n, l_len, c),
                               (0, 2, 1)).astype(o_ref.dtype)


def resblock1d(x_ncl, w1_oik, w2_oik, g1, b1, g2, b2, *,
               matmul_dtype=jnp.float32):
    """ResBlock1D forward (training-mode BN), PyTorch layouts.

    x_ncl : (N, C, L) float32
    w*_oik: (C, C, 3) conv weights, PyTorch (out, in, k) layout
    g*/b* : (C,) BatchNorm weight / bias
    matmul_dtype: set to jnp.bfloat16 on v6e/v7x for higher MXU throughput
                  (f32 accumulation is kept either way).
    """
    n, c, l = x_ncl.shape

    # Tiny weight glue only (no activation transposes in XLA):
    # (O, I, K) -> (K, I, O) -> (K*I, O) so row (k*C + i) matches the
    # [x[l-1] | x[l] | x[l+1]] channel stacking inside the kernel.
    w1f = jnp.transpose(w1_oik, (2, 1, 0)).reshape(3 * c, c)
    w2f = jnp.transpose(w2_oik, (2, 1, 0)).reshape(3 * c, c)
    g1r, b1r = g1.reshape(1, c), b1.reshape(1, c)
    g2r, b2r = g2.reshape(1, c), b2.reshape(1, c)

    full = lambda shape: pl.BlockSpec(shape, lambda i: (0,) * len(shape))

    return pl.pallas_call(
        functools.partial(_resblock_kernel, matmul_dtype=matmul_dtype),
        out_shape=jax.ShapeDtypeStruct((n, c, l), jnp.float32),
        grid=(1,),
        in_specs=[
            full((n, c, l)),        # x (NCL, loaded once)
            full((3 * c, c)),       # w1 flattened
            full((3 * c, c)),       # w2 flattened
            full((1, c)),           # gamma1
            full((1, c)),           # beta1
            full((1, c)),           # gamma2
            full((1, c)),           # beta2
        ],
        out_specs=full((n, c, l)),
        compiler_params=pltpu.CompilerParams(
            dimension_semantics=("arbitrary",)),
    )(x_ncl, w1f, w2f, g1r, b1r, g2r, b2r)


def _reference(x, w1, w2, g1, b1, g2, b2):
    """Pure-JAX reference mirroring the PyTorch forward (training-mode BN)."""
    def conv(h, w):
        return lax.conv_general_dilated(
            h, w, window_strides=(1,), padding=((1, 1),),
            dimension_numbers=("NCH", "OIH", "NCH"),
            precision=lax.Precision.HIGHEST)

    def bn(h, gamma, beta):
        mean = jnp.mean(h, axis=(0, 2), keepdims=True)
        var = jnp.mean((h - mean) ** 2, axis=(0, 2), keepdims=True)
        return (gamma.reshape(1, -1, 1) * (h - mean) / jnp.sqrt(var + BN_EPS)
                + beta.reshape(1, -1, 1))

    h = jax.nn.relu(bn(conv(x, w1), g1, b1))
    h = bn(conv(h, w2), g2, b2)
    return jax.nn.relu(h + x)


if __name__ == "__main__":
    # Small but TPU-friendly shapes: C a multiple of 8 (sublanes),
    # L a multiple of 128 (lanes) -> lane-dense output stores.
    N, C, L = 2, 8, 128

    key = jax.random.PRNGKey(0)
    k1, k2, kx = jax.random.split(key, 3)

    x = jax.random.normal(kx, (N, C, L), dtype=jnp.float32)
    # Conv weights in PyTorch layout (Cout, Cin, K), no bias.
    w1 = 0.1 * jax.random.normal(k1, (C, C, 3), dtype=jnp.float32)
    w2 = 0.1 * jax.random.normal(k2, (C, C, 3), dtype=jnp.float32)
    # BatchNorm params as after __init__: weight=1, bias=0.
    g1 = jnp.ones((C,), jnp.float32)
    b1 = jnp.zeros((C,), jnp.float32)
    g2 = jnp.ones((C,), jnp.float32)
    b2 = jnp.zeros((C,), jnp.float32)

    out = resblock1d(x, w1, w2, g1, b1, g2, b2)
    out = jax.block_until_ready(out)

    ref = _reference(x, w1, w2, g1, b1, g2, b2)
    assert out.shape == (N, C, L)
    err = float(jnp.max(jnp.abs(out - ref)))
    assert jnp.allclose(out, ref, atol=1e-4, rtol=1e-4), (
        "mismatch vs reference: max abs err = %e" % err)

    print("KERNEL_OK")
</pallas_src>

<mosaic_0001>
module attributes {stable_mosaic.version = 11 : i64} {
  func.func @_resblock_kernel(%arg0: i32, %arg1: memref<2x8x128xf32, #tpu.memory_space<vmem>>, %arg2: memref<24x8xf32, #tpu.memory_space<vmem>>, %arg3: memref<24x8xf32, #tpu.memory_space<vmem>>, %arg4: memref<1x8xf32, #tpu.memory_space<vmem>>, %arg5: memref<1x8xf32, #tpu.memory_space<vmem>>, %arg6: memref<1x8xf32, #tpu.memory_space<vmem>>, %arg7: memref<1x8xf32, #tpu.memory_space<vmem>>, %arg8: memref<2x8x128xf32, #tpu.memory_space<vmem>>) attributes {dimension_semantics = [#tpu.dimension_semantics<arbitrary>], iteration_bounds = array<i64: 1>, scalar_prefetch = 0 : i64, scratch_operands = 0 : i64, tpu.core_type = #tpu.core_type<tc>, window_params = [{pipeline_mode = #tpu.pipeline_mode<synchronous>, transform_indices = @transform_0, window_bounds = array<i64: 2, 8, 128>}, {pipeline_mode = #tpu.pipeline_mode<synchronous>, transform_indices = @transform_1, window_bounds = array<i64: 24, 8>}, {pipeline_mode = #tpu.pipeline_mode<synchronous>, transform_indices = @transform_2, window_bounds = array<i64: 24, 8>}, {pipeline_mode = #tpu.pipeline_mode<synchronous>, transform_indices = @transform_3, window_bounds = array<i64: 1, 8>}, {pipeline_mode = #tpu.pipeline_mode<synchronous>, transform_indices = @transform_4, window_bounds = array<i64: 1, 8>}, {pipeline_mode = #tpu.pipeline_mode<synchronous>, transform_indices = @transform_5, window_bounds = array<i64: 1, 8>}, {pipeline_mode = #tpu.pipeline_mode<synchronous>, transform_indices = @transform_6, window_bounds = array<i64: 1, 8>}, {pipeline_mode = #tpu.pipeline_mode<synchronous>, transform_indices = @transform_7, window_bounds = array<i64: 2, 8, 128>}]} {
    %c0 = arith.constant 0 : index
    %c0_0 = arith.constant 0 : index
    %c0_1 = arith.constant 0 : index
    %0 = vector.load %arg1[%c0, %c0_0, %c0_1] : memref<2x8x128xf32, #tpu.memory_space<vmem>>, vector<2x8x128xf32>
    %1 = tpu.transpose %0, [0, 2, 1] : vector<2x8x128xf32> -> vector<2x128x8xf32>
    %2 = vector.shape_cast %1 : vector<2x128x8xf32> to vector<256x8xf32>
    %3 = tpu.iota {dimensions = array<i32: 0>} : vector<256x1xi32>
    %c128_i32 = arith.constant 128 : i32
    %4 = vector.broadcast %c128_i32 : i32 to vector<256x1xi32>
    %5 = arith.remsi %3, %4 : vector<256x1xi32>
    %c0_i32 = arith.constant 0 : i32
    %6 = vector.broadcast %c0_i32 : i32 to vector<256x1xi32>
    %7 = arith.cmpi sgt, %5, %6 : vector<256x1xi32>
    %c127_i32 = arith.constant 127 : i32
    %8 = vector.broadcast %c127_i32 : i32 to vector<256x1xi32>
    %9 = arith.cmpi slt, %5, %8 : vector<256x1xi32>
    %c1_i32 = arith.constant 1 : i32
    %10 = tpu.dynamic_rotate %2 by %c1_i32 dim 0 : vector<256x8xf32>, i32 -> vector<256x8xf32>
    %cst = arith.constant 0.000000e+00 : f32
    %11 = vector.shape_cast %7 : vector<256x1xi1> to vector<256x1xi1>
    %12 = vector.broadcast %11 : vector<256x1xi1> to vector<256x8xi1>
    %13 = vector.broadcast %cst : f32 to vector<256x8xf32>
    %14 = arith.select %12, %10, %13 : vector<256x8xi1>, vector<256x8xf32>
    %c255_i32 = arith.constant 255 : i32
    %15 = tpu.dynamic_rotate %2 by %c255_i32 dim 0 : vector<256x8xf32>, i32 -> vector<256x8xf32>
    %cst_2 = arith.constant 0.000000e+00 : f32
    %16 = vector.shape_cast %9 : vector<256x1xi1> to vector<256x1xi1>
    %17 = vector.broadcast %16 : vector<256x1xi1> to vector<256x8xi1>
    %18 = vector.broadcast %cst_2 : f32 to vector<256x8xf32>
    %19 = arith.select %17, %15, %18 : vector<256x8xi1>, vector<256x8xf32>
    %20 = tpu.concatenate %14, %2, %19 in 1 : vector<256x8xf32>, vector<256x8xf32>, vector<256x8xf32> -> vector<256x24xf32>
    %c0_3 = arith.constant 0 : index
    %c0_4 = arith.constant 0 : index
    %21 = vector.load %arg2[%c0_3, %c0_4] : memref<24x8xf32, #tpu.memory_space<vmem>>, vector<24x8xf32>
    %cst_5 = arith.constant dense<0.000000e+00> : vector<256x8xf32>
    %22 = tpu.matmul %20, %21, %cst_5 {dimension_numbers = #tpu.dot_dimension_numbers<[1], [0], [0], [1], [0, 0, 1, 1], [], []>} : vector<256x24xf32>, vector<24x8xf32>, vector<256x8xf32> -> vector<256x8xf32>
    %c0_6 = arith.constant 0 : index
    %c0_7 = arith.constant 0 : index
    %23 = vector.load %arg4[%c0_6, %c0_7] : memref<1x8xf32, #tpu.memory_space<vmem>>, vector<1x8xf32>
    %c0_8 = arith.constant 0 : index
    %c0_9 = arith.constant 0 : index
    %24 = vector.load %arg5[%c0_8, %c0_9] : memref<1x8xf32, #tpu.memory_space<vmem>>, vector<1x8xf32>
    %cst_10 = arith.constant dense<0.000000e+00> : vector<8xf32>
    %25 = vector.multi_reduction <add>, %22, %cst_10 [0] : vector<256x8xf32> to vector<8xf32>
    %26 = vector.shape_cast %25 : vector<8xf32> to vector<1x8xf32>
    %27 = arith.mulf %22, %22 : vector<256x8xf32>
    %cst_11 = arith.constant dense<0.000000e+00> : vector<8xf32>
    %28 = vector.multi_reduction <add>, %27, %cst_11 [0] : vector<256x8xf32> to vector<8xf32>
    %29 = vector.shape_cast %28 : vector<8xf32> to vector<1x8xf32>
    %cst_12 = arith.constant 3.906250e-03 : f32
    %30 = vector.broadcast %cst_12 : f32 to vector<1x8xf32>
    %31 = arith.mulf %26, %30 : vector<1x8xf32>
    %cst_13 = arith.constant 3.906250e-03 : f32
    %32 = vector.broadcast %cst_13 : f32 to vector<1x8xf32>
    %33 = arith.mulf %29, %32 : vector<1x8xf32>
    %34 = arith.mulf %31, %31 : vector<1x8xf32>
    %35 = arith.subf %33, %34 : vector<1x8xf32>
    %cst_14 = arith.constant 0.000000e+00 : f32
    %36 = vector.broadcast %cst_14 : f32 to vector<1x8xf32>
    %37 = arith.maximumf %35, %36 : vector<1x8xf32>
    %cst_15 = arith.constant 9.99999974E-6 : f32
    %38 = vector.broadcast %cst_15 : f32 to vector<1x8xf32>
    %39 = arith.addf %37, %38 : vector<1x8xf32>
    %40 = math.rsqrt %39 : vector<1x8xf32>
    %41 = arith.mulf %23, %40 : vector<1x8xf32>
    %42 = arith.mulf %31, %41 : vector<1x8xf32>
    %43 = arith.subf %24, %42 : vector<1x8xf32>
    %44 = vector.broadcast %41 : vector<1x8xf32> to vector<256x8xf32>
    %45 = arith.mulf %22, %44 : vector<256x8xf32>
    %46 = vector.broadcast %43 : vector<1x8xf32> to vector<256x8xf32>
    %47 = arith.addf %45, %46 : vector<256x8xf32>
    %cst_16 = arith.constant 0.000000e+00 : f32
    %48 = vector.broadcast %cst_16 : f32 to vector<256x8xf32>
    %49 = arith.maximumf %47, %48 : vector<256x8xf32>
    %c1_i32_17 = arith.constant 1 : i32
    %50 = tpu.dynamic_rotate %49 by %c1_i32_17 dim 0 : vector<256x8xf32>, i32 -> vector<256x8xf32>
    %cst_18 = arith.constant 0.000000e+00 : f32
    %51 = vector.shape_cast %7 : vector<256x1xi1> to vector<256x1xi1>
    %52 = vector.broadcast %51 : vector<256x1xi1> to vector<256x8xi1>
    %53 = vector.broadcast %cst_18 : f32 to vector<256x8xf32>
    %54 = arith.select %52, %50, %53 : vector<256x8xi1>, vector<256x8xf32>
    %c255_i32_19 = arith.constant 255 : i32
    %55 = tpu.dynamic_rotate %49 by %c255_i32_19 dim 0 : vector<256x8xf32>, i32 -> vector<256x8xf32>
    %cst_20 = arith.constant 0.000000e+00 : f32
    %56 = vector.shape_cast %9 : vector<256x1xi1> to vector<256x1xi1>
    %57 = vector.broadcast %56 : vector<256x1xi1> to vector<256x8xi1>
    %58 = vector.broadcast %cst_20 : f32 to vector<256x8xf32>
    %59 = arith.select %57, %55, %58 : vector<256x8xi1>, vector<256x8xf32>
    %60 = tpu.concatenate %54, %49, %59 in 1 : vector<256x8xf32>, vector<256x8xf32>, vector<256x8xf32> -> vector<256x24xf32>
    %c0_21 = arith.constant 0 : index
    %c0_22 = arith.constant 0 : index
    %61 = vector.load %arg3[%c0_21, %c0_22] : memref<24x8xf32, #tpu.memory_space<vmem>>, vector<24x8xf32>
    %cst_23 = arith.constant dense<0.000000e+00> : vector<256x8xf32>
    %62 = tpu.matmul %60, %61, %cst_23 {dimension_numbers = #tpu.dot_dimension_numbers<[1], [0], [0], [1], [0, 0, 1, 1], [], []>} : vector<256x24xf32>, vector<24x8xf32>, vector<256x8xf32> -> vector<256x8xf32>
    %c0_24 = arith.constant 0 : index
    %c0_25 = arith.constant 0 : index
    %63 = vector.load %arg6[%c0_24, %c0_25] : memref<1x8xf32, #tpu.memory_space<vmem>>, vector<1x8xf32>
    %c0_26 = arith.constant 0 : index
    %c0_27 = arith.constant 0 : index
    %64 = vector.load %arg7[%c0_26, %c0_27] : memref<1x8xf32, #tpu.memory_space<vmem>>, vector<1x8xf32>
    %cst_28 = arith.constant dense<0.000000e+00> : vector<8xf32>
    %65 = vector.multi_reduction <add>, %62, %cst_28 [0] : vector<256x8xf32> to vector<8xf32>
    %66 = vector.shape_cast %65 : vector<8xf32> to vector<1x8xf32>
    %67 = arith.mulf %62, %62 : vector<256x8xf32>
    %cst_29 = arith.constant dense<0.000000e+00> : vector<8xf32>
    %68 = vector.multi_reduction <add>, %67, %cst_29 [0] : vector<256x8xf32> to vector<8xf32>
    %69 = vector.shape_cast %68 : vector<8xf32> to vector<1x8xf32>
    %cst_30 = arith.constant 3.906250e-03 : f32
    %70 = vector.broadcast %cst_30 : f32 to vector<1x8xf32>
    %71 = arith.mulf %66, %70 : vector<1x8xf32>
    %cst_31 = arith.constant 3.906250e-03 : f32
    %72 = vector.broadcast %cst_31 : f32 to vector<1x8xf32>
    %73 = arith.mulf %69, %72 : vector<1x8xf32>
    %74 = arith.mulf %71, %71 : vector<1x8xf32>
    %75 = arith.subf %73, %74 : vector<1x8xf32>
    %cst_32 = arith.constant 0.000000e+00 : f32
    %76 = vector.broadcast %cst_32 : f32 to vector<1x8xf32>
    %77 = arith.maximumf %75, %76 : vector<1x8xf32>
    %cst_33 = arith.constant 9.99999974E-6 : f32
    %78 = vector.broadcast %cst_33 : f32 to vector<1x8xf32>
    %79 = arith.addf %77, %78 : vector<1x8xf32>
    %80 = math.rsqrt %79 : vector<1x8xf32>
    %81 = arith.mulf %63, %80 : vector<1x8xf32>
    %82 = arith.mulf %71, %81 : vector<1x8xf32>
    %83 = arith.subf %64, %82 : vector<1x8xf32>
    %84 = vector.broadcast %81 : vector<1x8xf32> to vector<256x8xf32>
    %85 = arith.mulf %62, %84 : vector<256x8xf32>
    %86 = vector.broadcast %83 : vector<1x8xf32> to vector<256x8xf32>
    %87 = arith.addf %85, %86 : vector<256x8xf32>
    %88 = arith.addf %87, %2 : vector<256x8xf32>
    %cst_34 = arith.constant 0.000000e+00 : f32
    %89 = vector.broadcast %cst_34 : f32 to vector<256x8xf32>
    %90 = arith.maximumf %88, %89 : vector<256x8xf32>
    %91 = vector.shape_cast %90 : vector<256x8xf32> to vector<2x128x8xf32>
    %92 = tpu.transpose %91, [0, 2, 1] : vector<2x128x8xf32> -> vector<2x8x128xf32>
    %c0_35 = arith.constant 0 : index
    %c0_36 = arith.constant 0 : index
    %c0_37 = arith.constant 0 : index
    %93 = vector.load %arg8[%c0_35, %c0_36, %c0_37] : memref<2x8x128xf32, #tpu.memory_space<vmem>>, vector<2x8x128xf32>
    tpu.vector_store %arg8[%c0_35, %c0_36, %c0_37], %92 {strides = array<i32>} : memref<2x8x128xf32, #tpu.memory_space<vmem>>, vector<2x8x128xf32>,
    return
  }
  func.func @transform_0(%arg0: i32) -> (i32, i32, i32) {
    %c0_i32 = arith.constant 0 : i32
    %c0_i32_0 = arith.constant 0 : i32
    %c0_i32_1 = arith.constant 0 : i32
    %c0_i32_2 = arith.constant 0 : i32
    return %c0_i32, %c0_i32_0, %c0_i32_1 : i32, i32, i32
  }
  func.func @transform_1(%arg0: i32) -> (i32, i32) {
    %c0_i32 = arith.constant 0 : i32
    %c0_i32_0 = arith.constant 0 : i32
    %c0_i32_1 = arith.constant 0 : i32
    return %c0_i32, %c0_i32_0 : i32, i32
  }
  func.func @transform_2(%arg0: i32) -> (i32, i32) {
    %c0_i32 = arith.constant 0 : i32
    %c0_i32_0 = arith.constant 0 : i32
    %c0_i32_1 = arith.constant 0 : i32
    return %c0_i32, %c0_i32_0 : i32, i32
  }
  func.func @transform_3(%arg0: i32) -> (i32, i32) {
    %c0_i32 = arith.constant 0 : i32
    %c0_i32_0 = arith.constant 0 : i32
    %c0_i32_1 = arith.constant 0 : i32
    return %c0_i32, %c0_i32_0 : i32, i32
  }
  func.func @transform_4(%arg0: i32) -> (i32, i32) {
    %c0_i32 = arith.constant 0 : i32
    %c0_i32_0 = arith.constant 0 : i32
    %c0_i32_1 = arith.constant 0 : i32
    return %c0_i32, %c0_i32_0 : i32, i32
  }
  func.func @transform_5(%arg0: i32) -> (i32, i32) {
    %c0_i32 = arith.constant 0 : i32
    %c0_i32_0 = arith.constant 0 : i32
    %c0_i32_1 = arith.constant 0 : i32
    return %c0_i32, %c0_i32_0 : i32, i32
  }
  func.func @transform_6(%arg0: i32) -> (i32, i32) {
    %c0_i32 = arith.constant 0 : i32
    %c0_i32_0 = arith.constant 0 : i32
    %c0_i32_1 = arith.constant 0 : i32
    return %c0_i32, %c0_i32_0 : i32, i32
  }
  func.func @transform_7(%arg0: i32) -> (i32, i32, i32) {
    %c0_i32 = arith.constant 0 : i32
    %c0_i32_0 = arith.constant 0 : i32
    %c0_i32_1 = arith.constant 0 : i32
    %c0_i32_2 = arith.constant 0 : i32
    return %c0_i32, %c0_i32_0, %c0_i32_1 : i32, i32, i32
  }
}

</mosaic_0001>

<llo_original>
// kernel: tpu_custom_call.1
$region0: #{tpu_custom_call.1}
  #allocation0 [shape = 'u32[]', space=smem, size = 0x4, offset = 0x4, fixed_abs, tag = 'smem constant byte address 0x4 - core index']
  #allocation1 [shape = 'u32[144,128]{1,0:T(1,128)}', space=vmem, size = 0x12000, scoped, tag = 'internal scratch']
  %s0 = inlined_call_operand.vmem [shape: f32[2,8,128], index: 0, kind: input, shape index: {}]
  %s1 = inlined_call_operand.vmem [shape: f32[24,8], index: 1, kind: input, shape index: {}]
  %s2 = inlined_call_operand.vmem [shape: f32[24,8], index: 2, kind: input, shape index: {}]
  %s3 = inlined_call_operand.vmem [shape: f32[1,8], index: 3, kind: input, shape index: {}]
  %s4 = inlined_call_operand.vmem [shape: f32[1,8], index: 4, kind: input, shape index: {}]
  %s5 = inlined_call_operand.vmem [shape: f32[1,8], index: 5, kind: input, shape index: {}]
  %s6 = inlined_call_operand.vmem [shape: f32[1,8], index: 6, kind: input, shape index: {}]
  %s7 = inlined_call_operand.hbm [shape: f32[2,8,128], index: 7, kind: output, shape index: {}]
  %s8 = sld [smem:[#allocation0]]
  $region38: #{tpu_custom_call.1} parent=0
    _
  %s10 = ssub.s32 1, %s8
  %s11 = scalar_select 0, %s10, %s8
  $region1: #{tpu_custom_call.1} parent=0
    #allocation2 [shape = 'u8[8192]{0}', space=vmem, size = 0x2000, scoped, tag = 'output window, operand 0, single buffered']
    #allocation3 [shape = 's32[1]{0}', space=sflag, size = 0x4, scoped, tag = 'scoped memory for tpu_custom_call.1']
    %12 = vsyncpa [#allocation3], 0
    // Predicated region
    $region2: #{tpu_custom_call.1} parent=1 // pred_check
      _
    $region3: #{tpu_custom_call.1} parent=1 // pred_check_branch
      %14 = sbr.rel (0) target = $region5
    $region4: #{tpu_custom_call.1} parent=1 // pred_region
      _
    $region5: #{tpu_custom_call.1} parent=1 // pred_fallthru
      _
    // Predicated region
    $region6: #{tpu_custom_call.1} parent=1 // pred_check
      _
    $region7: #{tpu_custom_call.1} parent=1 // pred_check_branch
      %16 = sbr.rel (0) target = $region9
    $region8: #{tpu_custom_call.1} parent=1 // pred_region
      _
    $region9: #{tpu_custom_call.1} parent=1 // pred_fallthru
      _
    // Predicated region
    $region10: #{tpu_custom_call.1} parent=1 // pred_check
      _
    $region11: #{tpu_custom_call.1} parent=1 // pred_check_branch
      %18 = sbr.rel (0) target = $region13
    $region12: #{tpu_custom_call.1} parent=1 // pred_region
      _
    $region13: #{tpu_custom_call.1} parent=1 // pred_fallthru
      _
    // Predicated region
    $region14: #{tpu_custom_call.1} parent=1 // pred_check
      _
    $region15: #{tpu_custom_call.1} parent=1 // pred_check_branch
      %20 = sbr.rel (0) target = $region17
    $region16: #{tpu_custom_call.1} parent=1 // pred_region
      _
    $region17: #{tpu_custom_call.1} parent=1 // pred_fallthru
      _
    // Predicated region
    $region18: #{tpu_custom_call.1} parent=1 // pred_check
      _
    $region19: #{tpu_custom_call.1} parent=1 // pred_check_branch
      %22 = sbr.rel (0) target = $region21
    $region20: #{tpu_custom_call.1} parent=1 // pred_region
      _
    $region21: #{tpu_custom_call.1} parent=1 // pred_fallthru
      _
    // Predicated region
    $region22: #{tpu_custom_call.1} parent=1 // pred_check
      _
    $region23: #{tpu_custom_call.1} parent=1 // pred_check_branch
      %24 = sbr.rel (0) target = $region25
    $region24: #{tpu_custom_call.1} parent=1 // pred_region
      _
    $region25: #{tpu_custom_call.1} parent=1 // pred_fallthru
      _
    // Predicated region
    $region26: #{tpu_custom_call.1} parent=1 // pred_check
      _
    $region27: #{tpu_custom_call.1} parent=1 // pred_check_branch
      %26 = sbr.rel (0) target = $region29
    $region28: #{tpu_custom_call.1} parent=1 // pred_region
      _
    $region29: #{tpu_custom_call.1} parent=1 // pred_fallthru
      _
    %v27 = vld [vmem:[%s0] sm:$0xff]
    %v28 = vld [vmem:[%s0 + $0x8] sm:$0xff]
    %29 = vxpose.xlu0.b32.start [1/16] %v27, 128
    %30 = vxpose.xlu0.b32.cont [2/16] 0.0, 128
    %31 = vxpose.xlu0.b32.cont [3/16] 0.0, 128
    %32 = vxpose.xlu0.b32.cont [4/16] 0.0, 128
    %33 = vxpose.xlu0.b32.cont [5/16] 0.0, 128
    %34 = vxpose.xlu0.b32.cont [6/16] 0.0, 128
    %35 = vxpose.xlu0.b32.cont [7/16] 0.0, 128
    %36 = vxpose.xlu0.b32.cont [8/16] 0.0, 128
    %37 = vxpose.xlu0.b32.cont [9/16] 0.0, 128
    %38 = vxpose.xlu0.b32.cont [10/16] 0.0, 128
    %39 = vxpose.xlu0.b32.cont [11/16] 0.0, 128
    %40 = vxpose.xlu0.b32.cont [12/16] 0.0, 128
    %41 = vxpose.xlu0.b32.cont [13/16] 0.0, 128
    %42 = vxpose.xlu0.b32.cont [14/16] 0.0, 128
    %43 = vxpose.xlu0.b32.cont [15/16] 0.0, 128
    %44 = vxpose.xlu0.b32.end [16/16] 0.0, 128
    %v45 = vpop.trf.xlu0
    %v46 = vpop.trf.xlu0
    %v47 = vpop.trf.xlu0
    %v48 = vpop.trf.xlu0
    %v49 = vpop.trf.xlu0
    %v50 = vpop.trf.xlu0
    %v51 = vpop.trf.xlu0
    %v52 = vpop.trf.xlu0
    %v53 = vpop.trf.xlu0
    %v54 = vpop.trf.xlu0
    %v55 = vpop.trf.xlu0
    %v56 = vpop.trf.xlu0
    %v57 = vpop.trf.xlu0
    %v58 = vpop.trf.xlu0
    %v59 = vpop.trf.xlu0
    %v60 = vpop.trf.xlu0
    %61 = vxpose.xlu0.b32.start [1/16] %v28, 128
    %62 = vxpose.xlu0.b32.cont [2/16] 0.0, 128
    %63 = vxpose.xlu0.b32.cont [3/16] 0.0, 128
    %64 = vxpose.xlu0.b32.cont [4/16] 0.0, 128
    %65 = vxpose.xlu0.b32.cont [5/16] 0.0, 128
    %66 = vxpose.xlu0.b32.cont [6/16] 0.0, 128
    %67 = vxpose.xlu0.b32.cont [7/16] 0.0, 128
    %68 = vxpose.xlu0.b32.cont [8/16] 0.0, 128
    %69 = vxpose.xlu0.b32.cont [9/16] 0.0, 128
    %70 = vxpose.xlu0.b32.cont [10/16] 0.0, 128
    %71 = vxpose.xlu0.b32.cont [11/16] 0.0, 128
    %72 = vxpose.xlu0.b32.cont [12/16] 0.0, 128
    %73 = vxpose.xlu0.b32.cont [13/16] 0.0, 128
    %74 = vxpose.xlu0.b32.cont [14/16] 0.0, 128
    %75 = vxpose.xlu0.b32.cont [15/16] 0.0, 128
    %76 = vxpose.xlu0.b32.end [16/16] 0.0, 128
    %v77 = vpop.trf.xlu0
    %v78 = vpop.trf.xlu0
    %v79 = vpop.trf.xlu0
    %v80 = vpop.trf.xlu0
    %v81 = vpop.trf.xlu0
    %v82 = vpop.trf.xlu0
    %v83 = vpop.trf.xlu0
    %v84 = vpop.trf.xlu0
    %v85 = vpop.trf.xlu0
    %v86 = vpop.trf.xlu0
    %v87 = vpop.trf.xlu0
    %v88 = vpop.trf.xlu0
    %v89 = vpop.trf.xlu0
    %v90 = vpop.trf.xlu0
    %v91 = vpop.trf.xlu0
    %v92 = vpop.trf.xlu0
    %v93 = vlaneseq
    %v94 = vshrl.u32 %v93, 7
    %v95 = vadd.s32 %v94, 8
    %v96 = vadd.s32 %v94, 16
    %v97 = vadd.s32 %v94, 24
    %v98 = vadd.s32 %v94, 32
    %v99 = vadd.s32 %v94, 40
    %v100 = vadd.s32 %v94, 48
    %v101 = vadd.s32 %v94, 56
    %v102 = vadd.s32 %v94, 64
    %v103 = vadd.s32 %v94, 72
    %v104 = vadd.s32 %v94, 80
    %v105 = vadd.s32 %v94, 88
    %v106 = vadd.s32 %v94, 96
    %v107 = vadd.s32 %v94, 104
    %v108 = vadd.s32 %v94, 112
    %v109 = vadd.s32 %v94, 120
    %v110 = vadd.s32 %v94, 128
    %v111 = vadd.s32 %v94, 136
    %v112 = vadd.s32 %v94, 144
    %v113 = vadd.s32 %v94, 152
    %v114 = vadd.s32 %v94, 160
    %v115 = vadd.s32 %v94, 168
    %v116 = vadd.s32 %v94, 176
    %v117 = vadd.s32 %v94, 184
    %v118 = vadd.s32 %v94, 192
    %v119 = vadd.s32 %v94, 200
    %v120 = vadd.s32 %v94, 208
    %v121 = vadd.s32 %v94, 216
    %v122 = vadd.s32 %v94, 224
    %v123 = vadd.s32 %v94, 232
    %v124 = vadd.s32 %v94, 240
    %v125 = vadd.s32 %v94, 248
    %vm126 = vcmp.lt.s32.totalorder %v94, 0
    %v127 = vsub.s32 0, %v94
    %v128 = vsel %vm126, %v127, %v94
    %v129 = vshrl.u32 %v128, 7
    %v130 = vand.u32 %v128, 127
    %v131 = vsub.s32 0, %v130
    %v132 = vsel %vm126, %v131, %v130
    %vm133 = vcmp.lt.s32.totalorder %v95, 0
    %v134 = vsub.s32 0, %v95
    %v135 = vsel %vm133, %v134, %v95
    %v136 = vshrl.u32 %v135, 7
    %v137 = vand.u32 %v135, 127
    %v138 = vsub.s32 0, %v137
    %v139 = vsel %vm133, %v138, %v137
    %vm140 = vcmp.lt.s32.totalorder %v96, 0
    %v141 = vsub.s32 0, %v96
    %v142 = vsel %vm140, %v141, %v96
    %v143 = vshrl.u32 %v142, 7
    %v144 = vand.u32 %v142, 127
    %v145 = vsub.s32 0, %v144
    %v146 = vsel %vm140, %v145, %v144
    %vm147 = vcmp.lt.s32.totalorder %v97, 0
    %v148 = vsub.s32 0, %v97
    %v149 = vsel %vm147, %v148, %v97
    %v150 = vshrl.u32 %v149, 7
    %v151 = vand.u32 %v149, 127
    %v152 = vsub.s32 0, %v151
    %v153 = vsel %vm147, %v152, %v151
    %vm154 = vcmp.lt.s32.totalorder %v98, 0
    %v155 = vsub.s32 0, %v98
    %v156 = vsel %vm154, %v155, %v98
    %v157 = vshrl.u32 %v156, 7
    %v158 = vand.u32 %v156, 127
    %v159 = vsub.s32 0, %v158
    %v160 = vsel %vm154, %v159, %v158
    %vm161 = vcmp.lt.s32.totalorder %v99, 0
    %v162 = vsub.s32 0, %v99
    %v163 = vsel %vm161, %v162, %v99
    %v164 = vshrl.u32 %v163, 7
    %v165 = vand.u32 %v163, 127
    %v166 = vsub.s32 0, %v165
    %v167 = vsel %vm161, %v166, %v165
    %vm168 = vcmp.lt.s32.totalorder %v100, 0
    %v169 = vsub.s32 0, %v100
    %v170 = vsel %vm168, %v169, %v100
    %v171 = vshrl.u32 %v170, 7
    %v172 = vand.u32 %v170, 127
    %v173 = vsub.s32 0, %v172
    %v174 = vsel %vm168, %v173, %v172
    %vm175 = vcmp.lt.s32.totalorder %v101, 0
    %v176 = vsub.s32 0, %v101
    %v177 = vsel %vm175, %v176, %v101
    %v178 = vshrl.u32 %v177, 7
    %v179 = vand.u32 %v177, 127
    %v180 = vsub.s32 0, %v179
    %v181 = vsel %vm175, %v180, %v179
    %vm182 = vcmp.lt.s32.totalorder %v102, 0
    %v183 = vsub.s32 0, %v102
    %v184 = vsel %vm182, %v183, %v102
    %v185 = vshrl.u32 %v184, 7
    %v186 = vand.u32 %v184, 127
    %v187 = vsub.s32 0, %v186
    %v188 = vsel %vm182, %v187, %v186
    %vm189 = vcmp.lt.s32.totalorder %v103, 0
    %v190 = vsub.s32 0, %v103
    %v191 = vsel %vm189, %v190, %v103
    %v192 = vshrl.u32 %v191, 7
    %v193 = vand.u32 %v191, 127
    %v194 = vsub.s32 0, %v193
    %v195 = vsel %vm189, %v194, %v193
    %vm196 = vcmp.lt.s32.totalorder %v104, 0
    %v197 = vsub.s32 0, %v104
    %v198 = vsel %vm196, %v197, %v104
    %v199 = vshrl.u32 %v198, 7
    %v200 = vand.u32 %v198, 127
    %v201 = vsub.s32 0, %v200
    %v202 = vsel %vm196, %v201, %v200
    %vm203 = vcmp.lt.s32.totalorder %v105, 0
    %v204 = vsub.s32 0, %v105
    %v205 = vsel %vm203, %v204, %v105
    %v206 = vshrl.u32 %v205, 7
    %v207 = vand.u32 %v205, 127
    %v208 = vsub.s32 0, %v207
    %v209 = vsel %vm203, %v208, %v207
    %vm210 = vcmp.lt.s32.totalorder %v106, 0
    %v211 = vsub.s32 0, %v106
    %v212 = vsel %vm210, %v211, %v106
    %v213 = vshrl.u32 %v212, 7
    %v214 = vand.u32 %v212, 127
    %v215 = vsub.s32 0, %v214
    %v216 = vsel %vm210, %v215, %v214
    %vm217 = vcmp.lt.s32.totalorder %v107, 0
    %v218 = vsub.s32 0, %v107
    %v219 = vsel %vm217, %v218, %v107
    %v220 = vshrl.u32 %v219, 7
    %v221 = vand.u32 %v219, 127
    %v222 = vsub.s32 0, %v221
    %v223 = vsel %vm217, %v222, %v221
    %vm224 = vcmp.lt.s32.totalorder %v108, 0
    %v225 = vsub.s32 0, %v108
    %v226 = vsel %vm224, %v225, %v108
    %v227 = vshrl.u32 %v226, 7
    %v228 = vand.u32 %v226, 127
    %v229 = vsub.s32 0, %v228
    %v230 = vsel %vm224, %v229, %v228
    %vm231 = vcmp.lt.s32.totalorder %v109, 0
    %v232 = vsub.s32 0, %v109
    %v233 = vsel %vm231, %v232, %v109
    %v234 = vshrl.u32 %v233, 7
    %v235 = vand.u32 %v233, 127
    %v236 = vsub.s32 0, %v235
    %v237 = vsel %vm231, %v236, %v235
    %vm238 = vcmp.lt.s32.totalorder %v110, 0
    %v239 = vsub.s32 0, %v110
    %v240 = vsel %vm238, %v239, %v110
    %v241 = vshrl.u32 %v240, 7
    %v242 = vand.u32 %v240, 127
    %v243 = vsub.s32 0, %v242
    %v244 = vsel %vm238, %v243, %v242
    %vm245 = vcmp.lt.s32.totalorder %v111, 0
    %v246 = vsub.s32 0, %v111
    %v247 = vsel %vm245, %v246, %v111
    %v248 = vshrl.u32 %v247, 7
    %v249 = vand.u32 %v247, 127
    %v250 = vsub.s32 0, %v249
    %v251 = vsel %vm245, %v250, %v249
    %vm252 = vcmp.lt.s32.totalorder %v112, 0
    %v253 = vsub.s32 0, %v112
    %v254 = vsel %vm252, %v253, %v112
    %v255 = vshrl.u32 %v254, 7
    %v256 = vand.u32 %v254, 127
    %v257 = vsub.s32 0, %v256
    %v258 = vsel %vm252, %v257, %v256
    %vm259 = vcmp.lt.s32.totalorder %v113, 0
    %v260 = vsub.s32 0, %v113
    %v261 = vsel %vm259, %v260, %v113
    %v262 = vshrl.u32 %v261, 7
    %v263 = vand.u32 %v261, 127
    %v264 = vsub.s32 0, %v263
    %v265 = vsel %vm259, %v264, %v263
    %vm266 = vcmp.lt.s32.totalorder %v114, 0
    %v267 = vsub.s32 0, %v114
    %v268 = vsel %vm266, %v267, %v114
    %v269 = vshrl.u32 %v268, 7
    %v270 = vand.u32 %v268, 127
    %v271 = vsub.s32 0, %v270
    %v272 = vsel %vm266, %v271, %v270
    %vm273 = vcmp.lt.s32.totalorder %v115, 0
    %v274 = vsub.s32 0, %v115
    %v275 = vsel %vm273, %v274, %v115
    %v276 = vshrl.u32 %v275, 7
    %v277 = vand.u32 %v275, 127
    %v278 = vsub.s32 0, %v277
    %v279 = vsel %vm273, %v278, %v277
    %vm280 = vcmp.lt.s32.totalorder %v116, 0
    %v281 = vsub.s32 0, %v116
    %v282 = vsel %vm280, %v281, %v116
    %v283 = vshrl.u32 %v282, 7
    %v284 = vand.u32 %v282, 127
    %v285 = vsub.s32 0, %v284
    %v286 = vsel %vm280, %v285, %v284
    %vm287 = vcmp.lt.s32.totalorder %v117, 0
    %v288 = vsub.s32 0, %v117
    %v289 = vsel %vm287, %v288, %v117
    %v290 = vshrl.u32 %v289, 7
    %v291 = vand.u32 %v289, 127
    %v292 = vsub.s32 0, %v291
    %v293 = vsel %vm287, %v292, %v291
    %vm294 = vcmp.lt.s32.totalorder %v118, 0
    %v295 = vsub.s32 0, %v118
    %v296 = vsel %vm294, %v295, %v118
    %v297 = vshrl.u32 %v296, 7
    %v298 = vand.u32 %v296, 127
    %v299 = vsub.s32 0, %v298
    %v300 = vsel %vm294, %v299, %v298
    %vm301 = vcmp.lt.s32.totalorder %v119, 0
    %v302 = vsub.s32 0, %v119
    %v303 = vsel %vm301, %v302, %v119
    %v304 = vshrl.u32 %v303, 7
    %v305 = vand.u32 %v303, 127
    %v306 = vsub.s32 0, %v305
    %v307 = vsel %vm301, %v306, %v305
    %vm308 = vcmp.lt.s32.totalorder %v120, 0
    %v309 = vsub.s32 0, %v120
    %v310 = vsel %vm308, %v309, %v120
    %v311 = vshrl.u32 %v310, 7
    %v312 = vand.u32 %v310, 127
    %v313 = vsub.s32 0, %v312
    %v314 = vsel %vm308, %v313, %v312
    %vm315 = vcmp.lt.s32.totalorder %v121, 0
    %v316 = vsub.s32 0, %v121
    %v317 = vsel %vm315, %v316, %v121
    %v318 = vshrl.u32 %v317, 7
    %v319 = vand.u32 %v317, 127
    %v320 = vsub.s32 0, %v319
    %v321 = vsel %vm315, %v320, %v319
    %vm322 = vcmp.lt.s32.totalorder %v122, 0
    %v323 = vsub.s32 0, %v122
    %v324 = vsel %vm322, %v323, %v122
    %v325 = vshrl.u32 %v324, 7
    %v326 = vand.u32 %v324, 127
    %v327 = vsub.s32 0, %v326
    %v328 = vsel %vm322, %v327, %v326
    %vm329 = vcmp.lt.s32.totalorder %v123, 0
    %v330 = vsub.s32 0, %v123
    %v331 = vsel %vm329, %v330, %v123
    %v332 = vshrl.u32 %v331, 7
    %v333 = vand.u32 %v331, 127
    %v334 = vsub.s32 0, %v333
    %v335 = vsel %vm329, %v334, %v333
    %vm336 = vcmp.lt.s32.totalorder %v124, 0
    %v337 = vsub.s32 0, %v124
    %v338 = vsel %vm336, %v337, %v124
    %v339 = vshrl.u32 %v338, 7
    %v340 = vand.u32 %v338, 127
    %v341 = vsub.s32 0, %v340
    %v342 = vsel %vm336, %v341, %v340
    %vm343 = vcmp.lt.s32.totalorder %v125, 0
    %v344 = vsub.s32 0, %v125
    %v345 = vsel %vm343, %v344, %v125
    %v346 = vshrl.u32 %v345, 7
    %v347 = vand.u32 %v345, 127
    %v348 = vsub.s32 0, %v347
    %v349 = vsel %vm343, %v348, %v347
    %vm350 = vcmp.gt.s32.totalorder %v132, 0
    %vm351 = vcmp.gt.s32.totalorder %v139, 0
    %vm352 = vcmp.gt.s32.totalorder %v146, 0
    %vm353 = vcmp.gt.s32.totalorder %v153, 0
    %vm354 = vcmp.gt.s32.totalorder %v160, 0
    %vm355 = vcmp.gt.s32.totalorder %v167, 0
    %vm356 = vcmp.gt.s32.totalorder %v174, 0
    %vm357 = vcmp.gt.s32.totalorder %v181, 0
    %vm358 = vcmp.gt.s32.totalorder %v188, 0
    %vm359 = vcmp.gt.s32.totalorder %v195, 0
    %vm360 = vcmp.gt.s32.totalorder %v202, 0
    %vm361 = vcmp.gt.s32.totalorder %v209, 0
    %vm362 = vcmp.gt.s32.totalorder %v216, 0
    %vm363 = vcmp.gt.s32.totalorder %v223, 0
    %vm364 = vcmp.gt.s32.totalorder %v230, 0
    %vm365 = vcmp.gt.s32.totalorder %v237, 0
    %vm366 = vcmp.gt.s32.totalorder %v244, 0
    %vm367 = vcmp.gt.s32.totalorder %v251, 0
    %vm368 = vcmp.gt.s32.totalorder %v258, 0
    %vm369 = vcmp.gt.s32.totalorder %v265, 0
    %vm370 = vcmp.gt.s32.totalorder %v272, 0
    %vm371 = vcmp.gt.s32.totalorder %v279, 0
    %vm372 = vcmp.gt.s32.totalorder %v286, 0
    %vm373 = vcmp.gt.s32.totalorder %v293, 0
    %vm374 = vcmp.gt.s32.totalorder %v300, 0
    %vm375 = vcmp.gt.s32.totalorder %v307, 0
    %vm376 = vcmp.gt.s32.totalorder %v314, 0
    %vm377 = vcmp.gt.s32.totalorder %v321, 0
    %vm378 = vcmp.gt.s32.totalorder %v328, 0
    %vm379 = vcmp.gt.s32.totalorder %v335, 0
    %vm380 = vcmp.gt.s32.totalorder %v342, 0
    %vm381 = vcmp.gt.s32.totalorder %v349, 0
    %vm382 = vcmp.lt.s32.totalorder %v132, 127
    %vm383 = vcmp.lt.s32.totalorder %v139, 127
    %vm384 = vcmp.lt.s32.totalorder %v146, 127
    %vm385 = vcmp.lt.s32.totalorder %v153, 127
    %vm386 = vcmp.lt.s32.totalorder %v160, 127
    %vm387 = vcmp.lt.s32.totalorder %v167, 127
    %vm388 = vcmp.lt.s32.totalorder %v174, 127
    %vm389 = vcmp.lt.s32.totalorder %v181, 127
    %vm390 = vcmp.lt.s32.totalorder %v188, 127
    %vm391 = vcmp.lt.s32.totalorder %v195, 127
    %vm392 = vcmp.lt.s32.totalorder %v202, 127
    %vm393 = vcmp.lt.s32.totalorder %v209, 127
    %vm394 = vcmp.lt.s32.totalorder %v216, 127
    %vm395 = vcmp.lt.s32.totalorder %v223, 127
    %vm396 = vcmp.lt.s32.totalorder %v230, 127
    %vm397 = vcmp.lt.s32.totalorder %v237, 127
    %vm398 = vcmp.lt.s32.totalorder %v244, 127
    %vm399 = vcmp.lt.s32.totalorder %v251, 127
    %vm400 = vcmp.lt.s32.totalorder %v258, 127
    %vm401 = vcmp.lt.s32.totalorder %v265, 127
    %vm402 = vcmp.lt.s32.totalorder %v272, 127
    %vm403 = vcmp.lt.s32.totalorder %v279, 127
    %vm404 = vcmp.lt.s32.totalorder %v286, 127
    %vm405 = vcmp.lt.s32.totalorder %v293, 127
    %vm406 = vcmp.lt.s32.totalorder %v300, 127
    %vm407 = vcmp.lt.s32.totalorder %v307, 127
    %vm408 = vcmp.lt.s32.totalorder %v314, 127
    %vm409 = vcmp.lt.s32.totalorder %v321, 127
    %vm410 = vcmp.lt.s32.totalorder %v328, 127
    %vm411 = vcmp.lt.s32.totalorder %v335, 127
    %vm412 = vcmp.lt.s32.totalorder %v342, 127
    %vm413 = vcmp.lt.s32.totalorder %v349, 127
    %v414 = vrot.slane %v45, 7
    %v415 = vrot.slane %v46, 7
    %v416 = vrot.slane %v47, 7
    %v417 = vrot.slane %v48, 7
    %v418 = vrot.slane %v49, 7
    %v419 = vrot.slane %v50, 7
    %v420 = vrot.slane %v51, 7
    %v421 = vrot.slane %v52, 7
    %v422 = vrot.slane %v53, 7
    %v423 = vrot.slane %v54, 7
    %v424 = vrot.slane %v55, 7
    %v425 = vrot.slane %v56, 7
    %v426 = vrot.slane %v57, 7
    %v427 = vrot.slane %v58, 7
    %v428 = vrot.slane %v59, 7
    %v429 = vrot.slane %v60, 7
    %v430 = vrot.slane %v77, 7
    %v431 = vrot.slane %v78, 7
    %v432 = vrot.slane %v79, 7
    %v433 = vrot.slane %v80, 7
    %v434 = vrot.slane %v81, 7
    %v435 = vrot.slane %v82, 7
    %v436 = vrot.slane %v83, 7
    %v437 = vrot.slane %v84, 7
    %v438 = vrot.slane %v85, 7
    %v439 = vrot.slane %v86, 7
    %v440 = vrot.slane %v87, 7
    %v441 = vrot.slane %v88, 7
    %v442 = vrot.slane %v89, 7
    %v443 = vrot.slane %v90, 7
    %v444 = vrot.slane %v91, 7
    %v445 = vrot.slane %v92, 7
    %vm446 = vcmp.lt.s32.totalorder %v94, 1
    %v447 = vsel %vm446, %v444, %v445
    %v448 = vsel %vm446, %v443, %v444
    %v449 = vsel %vm446, %v442, %v443
    %v450 = vsel %vm446, %v441, %v442
    %v451 = vsel %vm446, %v440, %v441
    %v452 = vsel %vm446, %v439, %v440
    %v453 = vsel %vm446, %v438, %v439
    %v454 = vsel %vm446, %v437, %v438
    %v455 = vsel %vm446, %v436, %v437
    %v456 = vsel %vm446, %v435, %v436
    %v457 = vsel %vm446, %v434, %v435
    %v458 = vsel %vm446, %v433, %v434
    %v459 = vsel %vm446, %v432, %v433
    %v460 = vsel %vm446, %v431, %v432
    %v461 = vsel %vm446, %v430, %v431
    %v462 = vsel %vm446, %v429, %v430
    %v463 = vsel %vm446, %v428, %v429
    %v464 = vsel %vm446, %v427, %v428
    %v465 = vsel %vm446, %v426, %v427
    %v466 = vsel %vm446, %v425, %v426
    %v467 = vsel %vm446, %v424, %v425
    %v468 = vsel %vm446, %v423, %v424
    %v469 = vsel %vm446, %v422, %v423
    %v470 = vsel %vm446, %v421, %v422
    %v471 = vsel %vm446, %v420, %v421
    %v472 = vsel %vm446, %v419, %v420
    %v473 = vsel %vm446, %v418, %v419
    %v474 = vsel %vm446, %v417, %v418
    %v475 = vsel %vm446, %v416, %v417
    %v476 = vsel %vm446, %v415, %v416
    %v477 = vsel %vm446, %v414, %v415
    %v478 = vsel %vm446, %v445, %v414
    %v479 = vsel %vm350, 1, 0
    %v480 = vsel %vm351, 1, 0
    %v481 = vsel %vm352, 1, 0
    %v482 = vsel %vm353, 1, 0
    %v483 = vsel %vm354, 1, 0
    %v484 = vsel %vm355, 1, 0
    %v485 = vsel %vm356, 1, 0
    %v486 = vsel %vm357, 1, 0
    %v487 = vsel %vm358, 1, 0
    %v488 = vsel %vm359, 1, 0
    %v489 = vsel %vm360, 1, 0
    %v490 = vsel %vm361, 1, 0
    %v491 = vsel %vm362, 1, 0
    %v492 = vsel %vm363, 1, 0
    %v493 = vsel %vm364, 1, 0
    %v494 = vsel %vm365, 1, 0
    %v495 = vsel %vm366, 1, 0
    %v496 = vsel %vm367, 1, 0
    %v497 = vsel %vm368, 1, 0
    %v498 = vsel %vm369, 1, 0
    %v499 = vsel %vm370, 1, 0
    %v500 = vsel %vm371, 1, 0
    %v501 = vsel %vm372, 1, 0
    %v502 = vsel %vm373, 1, 0
    %v503 = vsel %vm374, 1, 0
    %v504 = vsel %vm375, 1, 0
    %v505 = vsel %vm376, 1, 0
    %v506 = vsel %vm377, 1, 0
    %v507 = vsel %vm378, 1, 0
    %v508 = vsel %vm379, 1, 0
    %v509 = vsel %vm380, 1, 0
    %v510 = vsel %vm381, 1, 0
    %vm511 = vcmp.eq.s32.totalorder %v479, 1
    %vm512 = vcmp.eq.s32.totalorder %v480, 1
    %vm513 = vcmp.eq.s32.totalorder %v481, 1
    %vm514 = vcmp.eq.s32.totalorder %v482, 1
    %vm515 = vcmp.eq.s32.totalorder %v483, 1
    %vm516 = vcmp.eq.s32.totalorder %v484, 1
    %vm517 = vcmp.eq.s32.totalorder %v485, 1
    %vm518 = vcmp.eq.s32.totalorder %v486, 1
    %vm519 = vcmp.eq.s32.totalorder %v487, 1
    %vm520 = vcmp.eq.s32.totalorder %v488, 1
    %vm521 = vcmp.eq.s32.totalorder %v489, 1
    %vm522 = vcmp.eq.s32.totalorder %v490, 1
    %vm523 = vcmp.eq.s32.totalorder %v491, 1
    %vm524 = vcmp.eq.s32.totalorder %v492, 1
    %vm525 = vcmp.eq.s32.totalorder %v493, 1
    %vm526 = vcmp.eq.s32.totalorder %v494, 1
    %vm527 = vcmp.eq.s32.totalorder %v495, 1
    %vm528 = vcmp.eq.s32.totalorder %v496, 1
    %vm529 = vcmp.eq.s32.totalorder %v497, 1
    %vm530 = vcmp.eq.s32.totalorder %v498, 1
    %vm531 = vcmp.eq.s32.totalorder %v499, 1
    %vm532 = vcmp.eq.s32.totalorder %v500, 1
    %vm533 = vcmp.eq.s32.totalorder %v501, 1
    %vm534 = vcmp.eq.s32.totalorder %v502, 1
    %vm535 = vcmp.eq.s32.totalorder %v503, 1
    %vm536 = vcmp.eq.s32.totalorder %v504, 1
    %vm537 = vcmp.eq.s32.totalorder %v505, 1
    %vm538 = vcmp.eq.s32.totalorder %v506, 1
    %vm539 = vcmp.eq.s32.totalorder %v507, 1
    %vm540 = vcmp.eq.s32.totalorder %v508, 1
    %vm541 = vcmp.eq.s32.totalorder %v509, 1
    %vm542 = vcmp.eq.s32.totalorder %v510, 1
    %v543 = vsel %vm511, %v478, 0.0
    %v544 = vsel %vm512, %v477, 0.0
    %v545 = vsel %vm513, %v476, 0.0
    %v546 = vsel %vm514, %v475, 0.0
    %v547 = vsel %vm515, %v474, 0.0
    %v548 = vsel %vm516, %v473, 0.0
    %v549 = vsel %vm517, %v472, 0.0
    %v550 = vsel %vm518, %v471, 0.0
    %v551 = vsel %vm519, %v470, 0.0
    %v552 = vsel %vm520, %v469, 0.0
    %v553 = vsel %vm521, %v468, 0.0
    %v554 = vsel %vm522, %v467, 0.0
    %v555 = vsel %vm523, %v466, 0.0
    %v556 = vsel %vm524, %v465, 0.0
    %v557 = vsel %vm525, %v464, 0.0
    %v558 = vsel %vm526, %v463, 0.0
    %v559 = vsel %vm527, %v462, 0.0
    %v560 = vsel %vm528, %v461, 0.0
    %v561 = vsel %vm529, %v460, 0.0
    %v562 = vsel %vm530, %v459, 0.0
    %v563 = vsel %vm531, %v458, 0.0
    %v564 = vsel %vm532, %v457, 0.0
    %v565 = vsel %vm533, %v456, 0.0
    %v566 = vsel %vm534, %v455, 0.0
    %v567 = vsel %vm535, %v454, 0.0
    %v568 = vsel %vm536, %v453, 0.0
    %v569 = vsel %vm537, %v452, 0.0
    %v570 = vsel %vm538, %v451, 0.0
    %v571 = vsel %vm539, %v450, 0.0
    %v572 = vsel %vm540, %v449, 0.0
    %v573 = vsel %vm541, %v448, 0.0
    %v574 = vsel %vm542, %v447, 0.0
    %v575 = vrot.slane %v45, 1
    %v576 = vrot.slane %v46, 1
    %v577 = vrot.slane %v47, 1
    %v578 = vrot.slane %v48, 1
    %v579 = vrot.slane %v49, 1
    %v580 = vrot.slane %v50, 1
    %v581 = vrot.slane %v51, 1
    %v582 = vrot.slane %v52, 1
    %v583 = vrot.slane %v53, 1
    %v584 = vrot.slane %v54, 1
    %v585 = vrot.slane %v55, 1
    %v586 = vrot.slane %v56, 1
    %v587 = vrot.slane %v57, 1
    %v588 = vrot.slane %v58, 1
    %v589 = vrot.slane %v59, 1
    %v590 = vrot.slane %v60, 1
    %v591 = vrot.slane %v77, 1
    %v592 = vrot.slane %v78, 1
    %v593 = vrot.slane %v79, 1
    %v594 = vrot.slane %v80, 1
    %v595 = vrot.slane %v81, 1
    %v596 = vrot.slane %v82, 1
    %v597 = vrot.slane %v83, 1
    %v598 = vrot.slane %v84, 1
    %v599 = vrot.slane %v85, 1
    %v600 = vrot.slane %v86, 1
    %v601 = vrot.slane %v87, 1
    %v602 = vrot.slane %v88, 1
    %v603 = vrot.slane %v89, 1
    %v604 = vrot.slane %v90, 1
    %v605 = vrot.slane %v91, 1
    %v606 = vrot.slane %v92, 1
    %vm607 = vcmp.lt.s32.totalorder %v94, 7
    %v608 = vsel %vm607, %v605, %v606
    %v609 = vsel %vm607, %v604, %v605
    %v610 = vsel %vm607, %v603, %v604
    %v611 = vsel %vm607, %v602, %v603
    %v612 = vsel %vm607, %v601, %v602
    %v613 = vsel %vm607, %v600, %v601
    %v614 = vsel %vm607, %v599, %v600
    %v615 = vsel %vm607, %v598, %v599
    %v616 = vsel %vm607, %v597, %v598
    %v617 = vsel %vm607, %v596, %v597
    %v618 = vsel %vm607, %v595, %v596
    %v619 = vsel %vm607, %v594, %v595
    %v620 = vsel %vm607, %v593, %v594
    %v621 = vsel %vm607, %v592, %v593
    %v622 = vsel %vm607, %v591, %v592
    %v623 = vsel %vm607, %v590, %v591
    %v624 = vsel %vm607, %v589, %v590
    %v625 = vsel %vm607, %v588, %v589
    %v626 = vsel %vm607, %v587, %v588
    %v627 = vsel %vm607, %v586, %v587
    %v628 = vsel %vm607, %v585, %v586
    %v629 = vsel %vm607, %v584, %v585
    %v630 = vsel %vm607, %v583, %v584
    %v631 = vsel %vm607, %v582, %v583
    %v632 = vsel %vm607, %v581, %v582
    %v633 = vsel %vm607, %v580, %v581
    %v634 = vsel %vm607, %v579, %v580
    %v635 = vsel %vm607, %v578, %v579
    %v636 = vsel %vm607, %v577, %v578
    %v637 = vsel %vm607, %v576, %v577
    %v638 = vsel %vm607, %v575, %v576
    %v639 = vsel %vm607, %v606, %v575
    %v640 = vsel %vm382, 1, 0
    %v641 = vsel %vm383, 1, 0
    %v642 = vsel %vm384, 1, 0
    %v643 = vsel %vm385, 1, 0
    %v644 = vsel %vm386, 1, 0
    %v645 = vsel %vm387, 1, 0
    %v646 = vsel %vm388, 1, 0
    %v647 = vsel %vm389, 1, 0
    %v648 = vsel %vm390, 1, 0
    %v649 = vsel %vm391, 1, 0
    %v650 = vsel %vm392, 1, 0
    %v651 = vsel %vm393, 1, 0
    %v652 = vsel %vm394, 1, 0
    %v653 = vsel %vm395, 1, 0
    %v654 = vsel %vm396, 1, 0
    %v655 = vsel %vm397, 1, 0
    %v656 = vsel %vm398, 1, 0
    %v657 = vsel %vm399, 1, 0
    %v658 = vsel %vm400, 1, 0
    %v659 = vsel %vm401, 1, 0
    %v660 = vsel %vm402, 1, 0
    %v661 = vsel %vm403, 1, 0
    %v662 = vsel %vm404, 1, 0
    %v663 = vsel %vm405, 1, 0
    %v664 = vsel %vm406, 1, 0
    %v665 = vsel %vm407, 1, 0
    %v666 = vsel %vm408, 1, 0
    %v667 = vsel %vm409, 1, 0
    %v668 = vsel %vm410, 1, 0
    %v669 = vsel %vm411, 1, 0
    %v670 = vsel %vm412, 1, 0
    %v671 = vsel %vm413, 1, 0
    %vm672 = vcmp.eq.s32.totalorder %v640, 1
    %vm673 = vcmp.eq.s32.totalorder %v641, 1
    %vm674 = vcmp.eq.s32.totalorder %v642, 1
    %vm675 = vcmp.eq.s32.totalorder %v643, 1
    %vm676 = vcmp.eq.s32.totalorder %v644, 1
    %vm677 = vcmp.eq.s32.totalorder %v645, 1
    %vm678 = vcmp.eq.s32.totalorder %v646, 1
    %vm679 = vcmp.eq.s32.totalorder %v647, 1
    %vm680 = vcmp.eq.s32.totalorder %v648, 1
    %vm681 = vcmp.eq.s32.totalorder %v649, 1
    %vm682 = vcmp.eq.s32.totalorder %v650, 1
    %vm683 = vcmp.eq.s32.totalorder %v651, 1
    %vm684 = vcmp.eq.s32.totalorder %v652, 1
    %vm685 = vcmp.eq.s32.totalorder %v653, 1
    %vm686 = vcmp.eq.s32.totalorder %v654, 1
    %vm687 = vcmp.eq.s32.totalorder %v655, 1
    %vm688 = vcmp.eq.s32.totalorder %v656, 1
    %vm689 = vcmp.eq.s32.totalorder %v657, 1
    %vm690 = vcmp.eq.s32.totalorder %v658, 1
    %vm691 = vcmp.eq.s32.totalorder %v659, 1
    %vm692 = vcmp.eq.s32.totalorder %v660, 1
    %vm693 = vcmp.eq.s32.totalorder %v661, 1
    %vm694 = vcmp.eq.s32.totalorder %v662, 1
    %vm695 = vcmp.eq.s32.totalorder %v663, 1
    %vm696 = vcmp.eq.s32.totalorder %v664, 1
    %vm697 = vcmp.eq.s32.totalorder %v665, 1
    %vm698 = vcmp.eq.s32.totalorder %v666, 1
    %vm699 = vcmp.eq.s32.totalorder %v667, 1
    %vm700 = vcmp.eq.s32.totalorder %v668, 1
    %vm701 = vcmp.eq.s32.totalorder %v669, 1
    %vm702 = vcmp.eq.s32.totalorder %v670, 1
    %vm703 = vcmp.eq.s32.totalorder %v671, 1
    %v704 = vsel %vm672, %v638, 0.0
    %v705 = vsel %vm673, %v637, 0.0
    %v706 = vsel %vm674, %v636, 0.0
    %v707 = vsel %vm675, %v635, 0.0
    %v708 = vsel %vm676, %v634, 0.0
    %v709 = vsel %vm677, %v633, 0.0
    %v710 = vsel %vm678, %v632, 0.0
    %v711 = vsel %vm679, %v631, 0.0
    %v712 = vsel %vm680, %v630, 0.0
    %v713 = vsel %vm681, %v629, 0.0
    %v714 = vsel %vm682, %v628, 0.0
    %v715 = vsel %vm683, %v627, 0.0
    %v716 = vsel %vm684, %v626, 0.0
    %v717 = vsel %vm685, %v625, 0.0
    %v718 = vsel %vm686, %v624, 0.0
    %v719 = vsel %vm687, %v623, 0.0
    %v720 = vsel %vm688, %v622, 0.0
    %v721 = vsel %vm689, %v621, 0.0
    %v722 = vsel %vm690, %v620, 0.0
    %v723 = vsel %vm691, %v619, 0.0
    %v724 = vsel %vm692, %v618, 0.0
    %v725 = vsel %vm693, %v617, 0.0
    %v726 = vsel %vm694, %v616, 0.0
    %v727 = vsel %vm695, %v615, 0.0
    %v728 = vsel %vm696, %v614, 0.0
    %v729 = vsel %vm697, %v613, 0.0
    %v730 = vsel %vm698, %v612, 0.0
    %v731 = vsel %vm699, %v611, 0.0
    %v732 = vsel %vm700, %v610, 0.0
    %v733 = vsel %vm701, %v609, 0.0
    %v734 = vsel %vm702, %v608, 0.0
    %v735 = vsel %vm703, %v639, 0.0
    %768 = vrot.lane.b32.xlu0 %v45, 8
    %v769 = vpop.permute.xlu0 %768
    %770 = vrot.lane.b32.xlu0 %v46, 8
    %v771 = vpop.permute.xlu0 %770
    %772 = vrot.lane.b32.xlu0 %v47, 8
    %v773 = vpop.permute.xlu0 %772
    %774 = vrot.lane.b32.xlu0 %v48, 8
    %v775 = vpop.permute.xlu0 %774
    %776 = vrot.lane.b32.xlu0 %v49, 8
    %v777 = vpop.permute.xlu0 %776
    %778 = vrot.lane.b32.xlu0 %v50, 8
    %v779 = vpop.permute.xlu0 %778
    %780 = vrot.lane.b32.xlu0 %v51, 8
    %v781 = vpop.permute.xlu0 %780
    %782 = vrot.lane.b32.xlu0 %v52, 8
    %v783 = vpop.permute.xlu0 %782
    %784 = vrot.lane.b32.xlu0 %v53, 8
    %v785 = vpop.permute.xlu0 %784
    %786 = vrot.lane.b32.xlu0 %v54, 8
    %v787 = vpop.permute.xlu0 %786
    %788 = vrot.lane.b32.xlu0 %v55, 8
    %v789 = vpop.permute.xlu0 %788
    %790 = vrot.lane.b32.xlu0 %v56, 8
    %v791 = vpop.permute.xlu0 %790
    %792 = vrot.lane.b32.xlu0 %v57, 8
    %v793 = vpop.permute.xlu0 %792
    %794 = vrot.lane.b32.xlu0 %v58, 8
    %v795 = vpop.permute.xlu0 %794
    %796 = vrot.lane.b32.xlu0 %v59, 8
    %v797 = vpop.permute.xlu0 %796
    %798 = vrot.lane.b32.xlu0 %v60, 8
    %v799 = vpop.permute.xlu0 %798
    %800 = vrot.lane.b32.xlu0 %v77, 8
    %v801 = vpop.permute.xlu0 %800
    %802 = vrot.lane.b32.xlu0 %v78, 8
    %v803 = vpop.permute.xlu0 %802
    %804 = vrot.lane.b32.xlu0 %v79, 8
    %v805 = vpop.permute.xlu0 %804
    %806 = vrot.lane.b32.xlu0 %v80, 8
    %v807 = vpop.permute.xlu0 %806
    %808 = vrot.lane.b32.xlu0 %v81, 8
    %v809 = vpop.permute.xlu0 %808
    %810 = vrot.lane.b32.xlu0 %v82, 8
    %v811 = vpop.permute.xlu0 %810
    %812 = vrot.lane.b32.xlu0 %v83, 8
    %v813 = vpop.permute.xlu0 %812
    %814 = vrot.lane.b32.xlu0 %v84, 8
    %v815 = vpop.permute.xlu0 %814
    %816 = vrot.lane.b32.xlu0 %v85, 8
    %v817 = vpop.permute.xlu0 %816
    %818 = vrot.lane.b32.xlu0 %v86, 8
    %v819 = vpop.permute.xlu0 %818
    %820 = vrot.lane.b32.xlu0 %v87, 8
    %v821 = vpop.permute.xlu0 %820
    %822 = vrot.lane.b32.xlu0 %v88, 8
    %v823 = vpop.permute.xlu0 %822
    %824 = vrot.lane.b32.xlu0 %v89, 8
    %v825 = vpop.permute.xlu0 %824
    %826 = vrot.lane.b32.xlu0 %v90, 8
    %v827 = vpop.permute.xlu0 %826
    %828 = vrot.lane.b32.xlu0 %v91, 8
    %v829 = vpop.permute.xlu0 %828
    %830 = vrot.lane.b32.xlu0 %v92, 8
    %v831 = vpop.permute.xlu0 %830
    %896 = vrot.lane.b32.xlu0 %v704, 16
    %v897 = vpop.permute.xlu0 %896
    %898 = vrot.lane.b32.xlu0 %v705, 16
    %v899 = vpop.permute.xlu0 %898
    %900 = vrot.lane.b32.xlu0 %v706, 16
    %v901 = vpop.permute.xlu0 %900
    %902 = vrot.lane.b32.xlu0 %v707, 16
    %v903 = vpop.permute.xlu0 %902
    %904 = vrot.lane.b32.xlu0 %v708, 16
    %v905 = vpop.permute.xlu0 %904
    %906 = vrot.lane.b32.xlu0 %v709, 16
    %v907 = vpop.permute.xlu0 %906
    %908 = vrot.lane.b32.xlu0 %v710, 16
    %v909 = vpop.permute.xlu0 %908
    %910 = vrot.lane.b32.xlu0 %v711, 16
    %v911 = vpop.permute.xlu0 %910
    %912 = vrot.lane.b32.xlu0 %v712, 16
    %v913 = vpop.permute.xlu0 %912
    %914 = vrot.lane.b32.xlu0 %v713, 16
    %v915 = vpop.permute.xlu0 %914
    %916 = vrot.lane.b32.xlu0 %v714, 16
    %v917 = vpop.permute.xlu0 %916
    %918 = vrot.lane.b32.xlu0 %v715, 16
    %v919 = vpop.permute.xlu0 %918
    %920 = vrot.lane.b32.xlu0 %v716, 16
    %v921 = vpop.permute.xlu0 %920
    %922 = vrot.lane.b32.xlu0 %v717, 16
    %v923 = vpop.permute.xlu0 %922
    %924 = vrot.lane.b32.xlu0 %v718, 16
    %v925 = vpop.permute.xlu0 %924
    %926 = vrot.lane.b32.xlu0 %v719, 16
    %v927 = vpop.permute.xlu0 %926
    %928 = vrot.lane.b32.xlu0 %v720, 16
    %v929 = vpop.permute.xlu0 %928
    %930 = vrot.lane.b32.xlu0 %v721, 16
    %v931 = vpop.permute.xlu0 %930
    %932 = vrot.lane.b32.xlu0 %v722, 16
    %v933 = vpop.permute.xlu0 %932
    %934 = vrot.lane.b32.xlu0 %v723, 16
    %v935 = vpop.permute.xlu0 %934
    %936 = vrot.lane.b32.xlu0 %v724, 16
    %v937 = vpop.permute.xlu0 %936
    %938 = vrot.lane.b32.xlu0 %v725, 16
    %v939 = vpop.permute.xlu0 %938
    %940 = vrot.lane.b32.xlu0 %v726, 16
    %v941 = vpop.permute.xlu0 %940
    %942 = vrot.lane.b32.xlu0 %v727, 16
    %v943 = vpop.permute.xlu0 %942
    %944 = vrot.lane.b32.xlu0 %v728, 16
    %v945 = vpop.permute.xlu0 %944
    %946 = vrot.lane.b32.xlu0 %v729, 16
    %v947 = vpop.permute.xlu0 %946
    %948 = vrot.lane.b32.xlu0 %v730, 16
    %v949 = vpop.permute.xlu0 %948
    %950 = vrot.lane.b32.xlu0 %v731, 16
    %v951 = vpop.permute.xlu0 %950
    %952 = vrot.lane.b32.xlu0 %v732, 16
    %v953 = vpop.permute.xlu0 %952
    %954 = vrot.lane.b32.xlu0 %v733, 16
    %v955 = vpop.permute.xlu0 %954
    %956 = vrot.lane.b32.xlu0 %v734, 16
    %v957 = vpop.permute.xlu0 %956
    %958 = vrot.lane.b32.xlu0 %v735, 16
    %v959 = vpop.permute.xlu0 %958
    %vm992 = vcmask 64512
    %v993 = vsel %vm992, %v543, %v769
    %v994 = vsel %vm992, %v544, %v771
    %v995 = vsel %vm992, %v545, %v773
    %v996 = vsel %vm992, %v546, %v775
    %v997 = vsel %vm992, %v547, %v777
    %v998 = vsel %vm992, %v548, %v779
    %v999 = vsel %vm992, %v549, %v781
    %v1000 = vsel %vm992, %v550, %v783
    %v1001 = vsel %vm992, %v551, %v785
    %v1002 = vsel %vm992, %v552, %v787
    %v1003 = vsel %vm992, %v553, %v789
    %v1004 = vsel %vm992, %v554, %v791
    %v1005 = vsel %vm992, %v555, %v793
    %v1006 = vsel %vm992, %v556, %v795
    %v1007 = vsel %vm992, %v557, %v797
    %v1008 = vsel %vm992, %v558, %v799
    %v1009 = vsel %vm992, %v559, %v801
    %v1010 = vsel %vm992, %v560, %v803
    %v1011 = vsel %vm992, %v561, %v805
    %v1012 = vsel %vm992, %v562, %v807
    %v1013 = vsel %vm992, %v563, %v809
    %v1014 = vsel %vm992, %v564, %v811
    %v1015 = vsel %vm992, %v565, %v813
    %v1016 = vsel %vm992, %v566, %v815
    %v1017 = vsel %vm992, %v567, %v817
    %v1018 = vsel %vm992, %v568, %v819
    %v1019 = vsel %vm992, %v569, %v821
    %v1020 = vsel %vm992, %v570, %v823
    %v1021 = vsel %vm992, %v571, %v825
    %v1022 = vsel %vm992, %v572, %v827
    %v1023 = vsel %vm992, %v573, %v829
    %v1024 = vsel %vm992, %v574, %v831
    %vm1025 = vcmask 130048
    %v1026 = vsel %vm1025, %v993, %v897
    %v1027 = vsel %vm1025, %v994, %v899
    %v1028 = vsel %vm1025, %v995, %v901
    %v1029 = vsel %vm1025, %v996, %v903
    %v1030 = vsel %vm1025, %v997, %v905
    %v1031 = vsel %vm1025, %v998, %v907
    %v1032 = vsel %vm1025, %v999, %v909
    %v1033 = vsel %vm1025, %v1000, %v911
    %v1034 = vsel %vm1025, %v1001, %v913
    %v1035 = vsel %vm1025, %v1002, %v915
    %v1036 = vsel %vm1025, %v1003, %v917
    %v1037 = vsel %vm1025, %v1004, %v919
    %v1038 = vsel %vm1025, %v1005, %v921
    %v1039 = vsel %vm1025, %v1006, %v923
    %v1040 = vsel %vm1025, %v1007, %v925
    %v1041 = vsel %vm1025, %v1008, %v927
    %v1042 = vsel %vm1025, %v1009, %v929
    %v1043 = vsel %vm1025, %v1010, %v931
    %v1044 = vsel %vm1025, %v1011, %v933
    %v1045 = vsel %vm1025, %v1012, %v935
    %v1046 = vsel %vm1025, %v1013, %v937
    %v1047 = vsel %vm1025, %v1014, %v939
    %v1048 = vsel %vm1025, %v1015, %v941
    %v1049 = vsel %vm1025, %v1016, %v943
    %v1050 = vsel %vm1025, %v1017, %v945
    %v1051 = vsel %vm1025, %v1018, %v947
    %v1052 = vsel %vm1025, %v1019, %v949
    %v1053 = vsel %vm1025, %v1020, %v951
    %v1054 = vsel %vm1025, %v1021, %v953
    %v1055 = vsel %vm1025, %v1022, %v955
    %v1056 = vsel %vm1025, %v1023, %v957
    %v1057 = vsel %vm1025, %v1024, %v959
    %v1058 = vld [vmem:[%s1] sm:$0xff]
    %v1059 = vld [vmem:[%s1 + $0x8] sm:$0xff]
    %v1060 = vld [vmem:[%s1 + $0x10] sm:$0xff]
    %vm1061 = vcmask 195584
    %v1063 = vsel %vm1061, %v1026, 0
    %v1066 = vsel %vm1061, %v1027, 0
    %v1069 = vsel %vm1061, %v1028, 0
    %v1072 = vsel %vm1061, %v1029, 0
    %v1075 = vsel %vm1061, %v1030, 0
    %v1078 = vsel %vm1061, %v1031, 0
    %v1081 = vsel %vm1061, %v1032, 0
    %v1084 = vsel %vm1061, %v1033, 0
    %v1087 = vsel %vm1061, %v1034, 0
    %v1090 = vsel %vm1061, %v1035, 0
    %v1093 = vsel %vm1061, %v1036, 0
    %v1096 = vsel %vm1061, %v1037, 0
    %v1099 = vsel %vm1061, %v1038, 0
    %v1102 = vsel %vm1061, %v1039, 0
    %v1105 = vsel %vm1061, %v1040, 0
    %v1108 = vsel %vm1061, %v1041, 0
    %v1111 = vsel %vm1061, %v1042, 0
    %v1114 = vsel %vm1061, %v1043, 0
    %v1117 = vsel %vm1061, %v1044, 0
    %v1120 = vsel %vm1061, %v1045, 0
    %v1123 = vsel %vm1061, %v1046, 0
    %v1126 = vsel %vm1061, %v1047, 0
    %v1129 = vsel %vm1061, %v1048, 0
    %v1132 = vsel %vm1061, %v1049, 0
    %v1135 = vsel %vm1061, %v1050, 0
    %v1138 = vsel %vm1061, %v1051, 0
    %v1141 = vsel %vm1061, %v1052, 0
    %v1144 = vsel %vm1061, %v1053, 0
    %v1147 = vsel %vm1061, %v1054, 0
    %v1150 = vsel %vm1061, %v1055, 0
    %v1153 = vsel %vm1061, %v1056, 0
    %v1156 = vsel %vm1061, %v1057, 0
    %1158 = vmatprep.subr.mxu0 0.0
    %1159 = vmatpush1.msra.mxu0 0.0
    %1160 = vmatprep.subr.mxu0 0.0
    %1161 = vmatpush1.msra.mxu0 0.0
    %1162 = vmatprep.subr.mxu0 0.0
    %1163 = vmatpush1.msra.mxu0 0.0
    %1164 = vmatprep.subr.mxu0 0.0
    %1165 = vmatpush1.msra.mxu0 0.0
    %1166 = vmatprep.subr.mxu0 0.0
    %1167 = vmatpush1.msra.mxu0 0.0
    %1168 = vmatprep.subr.mxu0 0.0
    %1169 = vmatpush1.msra.mxu0 0.0
    %1170 = vmatprep.subr.mxu0 0.0
    %1171 = vmatpush1.msra.mxu0 0.0
    %1172 = vmatprep.subr.mxu0 0.0
    %1173 = vmatpush1.msra.mxu0 0.0
    %1174 = vmatprep.subr.mxu0 0.0
    %1175 = vmatpush1.msra.mxu0 0.0
    %1176 = vmatprep.subr.mxu0 0.0
    %1177 = vmatpush1.msra.mxu0 0.0
    %1178 = vmatprep.subr.mxu0 0.0
    %1179 = vmatpush1.msra.mxu0 0.0
    %1180 = vmatprep.subr.mxu0 0.0
    %1181 = vmatpush1.msra.mxu0 0.0
    %1182 = vmatprep.subr.mxu0 0.0
    %1183 = vmatpush1.msra.mxu0 0.0
    %1184 = vmatprep.subr.mxu0 0.0
    %1185 = vmatpush1.msra.mxu0 %v1060
    %1186 = vmatprep.subr.mxu0 0.0
    %1187 = vmatpush1.msra.mxu0 %v1059
    %1188 = vmatprep.subr.mxu0 0.0
    %1189 = vmatpush1.msra.mxu0 %v1058
    %1190 = vmatprep.subr.mxu0 0.0
    %1191 = vmatpush2.msra.mxu0 0.0
    %1192 = vmatprep.subr.mxu0 0.0
    %1193 = vmatpush2.msra.mxu0 0.0
    %1194 = vmatprep.subr.mxu0 0.0
    %1195 = vmatpush2.msra.mxu0 0.0
    %1196 = vmatprep.subr.mxu0 0.0
    %1197 = vmatpush2.msra.mxu0 0.0
    %1198 = vmatprep.subr.mxu0 0.0
    %1199 = vmatpush2.msra.mxu0 0.0
    %1200 = vmatprep.subr.mxu0 0.0
    %1201 = vmatpush2.msra.mxu0 0.0
    %1202 = vmatprep.subr.mxu0 0.0
    %1203 = vmatpush2.msra.mxu0 0.0
    %1204 = vmatprep.subr.mxu0 0.0
    %1205 = vmatpush2.msra.mxu0 0.0
    %1206 = vmatprep.subr.mxu0 0.0
    %1207 = vmatpush2.msra.mxu0 0.0
    %1208 = vmatprep.subr.mxu0 0.0
    %1209 = vmatpush2.msra.mxu0 0.0
    %1210 = vmatprep.subr.mxu0 0.0
    %1211 = vmatpush2.msra.mxu0 0.0
    %1212 = vmatprep.subr.mxu0 0.0
    %1213 = vmatpush2.msra.mxu0 0.0
    %1214 = vmatprep.subr.mxu0 0.0
    %1215 = vmatpush2.msra.mxu0 0.0
    %1216 = vmatprep.subr.mxu0 0.0
    %1217 = vmatpush2.msra.mxu0 0.0
    %1218 = vmatprep.subr.mxu0 0.0
    %1219 = vmatpush2.msra.mxu0 0.0
    %1220 = vmatprep.subr.mxu0 0.0
    %1221 = vmatpush2.msra.mxu0 0.0
    %1222 = vmatprep.mubr.f32.mxu0 0.0
    %1223 = vmatmul.mubr.f32.gmra.mxu0 %v1063
    %v1224 = vpop.f32.mrf.mxu0
    %v1225 = vadd.f32 0.0, %v1224
    %v1226 = vpop.f32.mrf.mxu0
    %1227 = vmatprep.mubr.f32.mxu0 0.0
    %1228 = vmatmul.mubr.f32.gmra.mxu0 %v1066
    %v1229 = vpop.f32.mrf.mxu0
    %v1230 = vadd.f32 0.0, %v1229
    %v1231 = vpop.f32.mrf.mxu0
    %1232 = vmatprep.mubr.f32.mxu0 0.0
    %1233 = vmatmul.mubr.f32.gmra.mxu0 %v1069
    %v1234 = vpop.f32.mrf.mxu0
    %v1235 = vadd.f32 0.0, %v1234
    %v1236 = vpop.f32.mrf.mxu0
    %1237 = vmatprep.mubr.f32.mxu0 0.0
    %1238 = vmatmul.mubr.f32.gmra.mxu0 %v1072
    %v1239 = vpop.f32.mrf.mxu0
    %v1240 = vadd.f32 0.0, %v1239
    %v1241 = vpop.f32.mrf.mxu0
    %1242 = vmatprep.mubr.f32.mxu0 0.0
    %1243 = vmatmul.mubr.f32.gmra.mxu0 %v1075
    %v1244 = vpop.f32.mrf.mxu0
    %v1245 = vadd.f32 0.0, %v1244
    %v1246 = vpop.f32.mrf.mxu0
    %1247 = vmatprep.mubr.f32.mxu0 0.0
    %1248 = vmatmul.mubr.f32.gmra.mxu0 %v1078
    %v1249 = vpop.f32.mrf.mxu0
    %v1250 = vadd.f32 0.0, %v1249
    %v1251 = vpop.f32.mrf.mxu0
    %1252 = vmatprep.mubr.f32.mxu0 0.0
    %1253 = vmatmul.mubr.f32.gmra.mxu0 %v1081
    %v1254 = vpop.f32.mrf.mxu0
    %v1255 = vadd.f32 0.0, %v1254
    %v1256 = vpop.f32.mrf.mxu0
    %1257 = vmatprep.mubr.f32.mxu0 0.0
    %1258 = vmatmul.mubr.f32.gmra.mxu0 %v1084
    %v1259 = vpop.f32.mrf.mxu0
    %v1260 = vadd.f32 0.0, %v1259
    %v1261 = vpop.f32.mrf.mxu0
    %1262 = vmatprep.mubr.f32.mxu0 0.0
    %1263 = vmatmul.mubr.f32.gmra.mxu0 %v1087
    %v1264 = vpop.f32.mrf.mxu0
    %v1265 = vadd.f32 0.0, %v1264
    %v1266 = vpop.f32.mrf.mxu0
    %1267 = vmatprep.mubr.f32.mxu0 0.0
    %1268 = vmatmul.mubr.f32.gmra.mxu0 %v1090
    %v1269 = vpop.f32.mrf.mxu0
    %v1270 = vadd.f32 0.0, %v1269
    %v1271 = vpop.f32.mrf.mxu0
    %1272 = vmatprep.mubr.f32.mxu0 0.0
    %1273 = vmatmul.mubr.f32.gmra.mxu0 %v1093
    %v1274 = vpop.f32.mrf.mxu0
    %v1275 = vadd.f32 0.0, %v1274
    %v1276 = vpop.f32.mrf.mxu0
    %1277 = vmatprep.mubr.f32.mxu0 0.0
    %1278 = vmatmul.mubr.f32.gmra.mxu0 %v1096
    %v1279 = vpop.f32.mrf.mxu0
    %v1280 = vadd.f32 0.0, %v1279
    %v1281 = vpop.f32.mrf.mxu0
    %1282 = vmatprep.mubr.f32.mxu0 0.0
    %1283 = vmatmul.mubr.f32.gmra.mxu0 %v1099
    %v1284 = vpop.f32.mrf.mxu0
    %v1285 = vadd.f32 0.0, %v1284
    %v1286 = vpop.f32.mrf.mxu0
    %1287 = vmatprep.mubr.f32.mxu0 0.0
    %1288 = vmatmul.mubr.f32.gmra.mxu0 %v1102
    %v1289 = vpop.f32.mrf.mxu0
    %v1290 = vadd.f32 0.0, %v1289
    %v1291 = vpop.f32.mrf.mxu0
    %1292 = vmatprep.mubr.f32.mxu0 0.0
    %1293 = vmatmul.mubr.f32.gmra.mxu0 %v1105
    %v1294 = vpop.f32.mrf.mxu0
    %v1295 = vadd.f32 0.0, %v1294
    %v1296 = vpop.f32.mrf.mxu0
    %1297 = vmatprep.mubr.f32.mxu0 0.0
    %1298 = vmatmul.mubr.f32.gmra.mxu0 %v1108
    %v1299 = vpop.f32.mrf.mxu0
    %v1300 = vadd.f32 0.0, %v1299
    %v1301 = vpop.f32.mrf.mxu0
    %1302 = vmatprep.mubr.f32.mxu0 0.0
    %1303 = vmatmul.mubr.f32.gmra.mxu0 %v1111
    %v1304 = vpop.f32.mrf.mxu0
    %v1305 = vadd.f32 0.0, %v1304
    %v1306 = vpop.f32.mrf.mxu0
    %1307 = vmatprep.mubr.f32.mxu0 0.0
    %1308 = vmatmul.mubr.f32.gmra.mxu0 %v1114
    %v1309 = vpop.f32.mrf.mxu0
    %v1310 = vadd.f32 0.0, %v1309
    %v1311 = vpop.f32.mrf.mxu0
    %1312 = vmatprep.mubr.f32.mxu0 0.0
    %1313 = vmatmul.mubr.f32.gmra.mxu0 %v1117
    %v1314 = vpop.f32.mrf.mxu0
    %v1315 = vadd.f32 0.0, %v1314
    %v1316 = vpop.f32.mrf.mxu0
    %1317 = vmatprep.mubr.f32.mxu0 0.0
    %1318 = vmatmul.mubr.f32.gmra.mxu0 %v1120
    %v1319 = vpop.f32.mrf.mxu0
    %v1320 = vadd.f32 0.0, %v1319
    %v1321 = vpop.f32.mrf.mxu0
    %1322 = vmatprep.mubr.f32.mxu0 0.0
    %1323 = vmatmul.mubr.f32.gmra.mxu0 %v1123
    %v1324 = vpop.f32.mrf.mxu0
    %v1325 = vadd.f32 0.0, %v1324
    %v1326 = vpop.f32.mrf.mxu0
    %1327 = vmatprep.mubr.f32.mxu0 0.0
    %1328 = vmatmul.mubr.f32.gmra.mxu0 %v1126
    %v1329 = vpop.f32.mrf.mxu0
    %v1330 = vadd.f32 0.0, %v1329
    %v1331 = vpop.f32.mrf.mxu0
    %1332 = vmatprep.mubr.f32.mxu0 0.0
    %1333 = vmatmul.mubr.f32.gmra.mxu0 %v1129
    %v1334 = vpop.f32.mrf.mxu0
    %v1335 = vadd.f32 0.0, %v1334
    %v1336 = vpop.f32.mrf.mxu0
    %1337 = vmatprep.mubr.f32.mxu0 0.0
    %1338 = vmatmul.mubr.f32.gmra.mxu0 %v1132
    %v1339 = vpop.f32.mrf.mxu0
    %v1340 = vadd.f32 0.0, %v1339
    %v1341 = vpop.f32.mrf.mxu0
    %1342 = vmatprep.mubr.f32.mxu0 0.0
    %1343 = vmatmul.mubr.f32.gmra.mxu0 %v1135
    %v1344 = vpop.f32.mrf.mxu0
    %v1345 = vadd.f32 0.0, %v1344
    %v1346 = vpop.f32.mrf.mxu0
    %1347 = vmatprep.mubr.f32.mxu0 0.0
    %1348 = vmatmul.mubr.f32.gmra.mxu0 %v1138
    %v1349 = vpop.f32.mrf.mxu0
    %v1350 = vadd.f32 0.0, %v1349
    %v1351 = vpop.f32.mrf.mxu0
    %1352 = vmatprep.mubr.f32.mxu0 0.0
    %1353 = vmatmul.mubr.f32.gmra.mxu0 %v1141
    %v1354 = vpop.f32.mrf.mxu0
    %v1355 = vadd.f32 0.0, %v1354
    %v1356 = vpop.f32.mrf.mxu0
    %1357 = vmatprep.mubr.f32.mxu0 0.0
    %1358 = vmatmul.mubr.f32.gmra.mxu0 %v1144
    %v1359 = vpop.f32.mrf.mxu0
    %v1360 = vadd.f32 0.0, %v1359
    %v1361 = vpop.f32.mrf.mxu0
    %1362 = vmatprep.mubr.f32.mxu0 0.0
    %1363 = vmatmul.mubr.f32.gmra.mxu0 %v1147
    %v1364 = vpop.f32.mrf.mxu0
    %v1365 = vadd.f32 0.0, %v1364
    %v1366 = vpop.f32.mrf.mxu0
    %1367 = vmatprep.mubr.f32.mxu0 0.0
    %1368 = vmatmul.mubr.f32.gmra.mxu0 %v1150
    %v1369 = vpop.f32.mrf.mxu0
    %v1370 = vadd.f32 0.0, %v1369
    %v1371 = vpop.f32.mrf.mxu0
    %1372 = vmatprep.mubr.f32.mxu0 0.0
    %1373 = vmatmul.mubr.f32.gmra.mxu0 %v1153
    %v1374 = vpop.f32.mrf.mxu0
    %v1375 = vadd.f32 0.0, %v1374
    %v1376 = vpop.f32.mrf.mxu0
    %1377 = vmatprep.mubr.f32.mxu0 0.0
    %1378 = vmatmul.mubr.f32.gmra.mxu0 %v1156
    %v1379 = vpop.f32.mrf.mxu0
    %v1380 = vadd.f32 0.0, %v1379
    %v1381 = vpop.f32.mrf.mxu0
    %1382 = vdwg.mxu0
    %v1383 = vld [vmem:[%s3] sm:$0x1]
    %v1384 = vld [vmem:[%s4] sm:$0x1]
    %v1385 = vsel %vm992, %v1225, 0.0
    %v1386 = vsel %vm992, %v1230, 0.0
    %v1387 = vadd.f32 %v1385, %v1386
    %v1388 = vsel %vm992, %v1235, 0.0
    %v1389 = vadd.f32 %v1387, %v1388
    %v1390 = vsel %vm992, %v1240, 0.0
    %v1391 = vadd.f32 %v1389, %v1390
    %v1392 = vsel %vm992, %v1245, 0.0
    %v1393 = vadd.f32 %v1391, %v1392
    %v1394 = vsel %vm992, %v1250, 0.0
    %v1395 = vadd.f32 %v1393, %v1394
    %v1396 = vsel %vm992, %v1255, 0.0
    %v1397 = vadd.f32 %v1395, %v1396
    %v1398 = vsel %vm992, %v1260, 0.0
    %v1399 = vadd.f32 %v1397, %v1398
    %v1400 = vsel %vm992, %v1265, 0.0
    %v1401 = vadd.f32 %v1399, %v1400
    %v1402 = vsel %vm992, %v1270, 0.0
    %v1403 = vadd.f32 %v1401, %v1402
    %v1404 = vsel %vm992, %v1275, 0.0
    %v1405 = vadd.f32 %v1403, %v1404
    %v1406 = vsel %vm992, %v1280, 0.0
    %v1407 = vadd.f32 %v1405, %v1406
    %v1408 = vsel %vm992, %v1285, 0.0
    %v1409 = vadd.f32 %v1407, %v1408
    %v1410 = vsel %vm992, %v1290, 0.0
    %v1411 = vadd.f32 %v1409, %v1410
    %v1412 = vsel %vm992, %v1295, 0.0
    %v1413 = vadd.f32 %v1411, %v1412
    %v1414 = vsel %vm992, %v1300, 0.0
    %v1415 = vadd.f32 %v1413, %v1414
    %v1416 = vsel %vm992, %v1305, 0.0
    %v1417 = vadd.f32 %v1415, %v1416
    %v1418 = vsel %vm992, %v1310, 0.0
    %v1419 = vadd.f32 %v1417, %v1418
    %v1420 = vsel %vm992, %v1315, 0.0
    %v1421 = vadd.f32 %v1419, %v1420
    %v1422 = vsel %vm992, %v1320, 0.0
    %v1423 = vadd.f32 %v1421, %v1422
    %v1424 = vsel %vm992, %v1325, 0.0
    %v1425 = vadd.f32 %v1423, %v1424
    %v1426 = vsel %vm992, %v1330, 0.0
    %v1427 = vadd.f32 %v1425, %v1426
    %v1428 = vsel %vm992, %v1335, 0.0
    %v1429 = vadd.f32 %v1427, %v1428
    %v1430 = vsel %vm992, %v1340, 0.0
    %v1431 = vadd.f32 %v1429, %v1430
    %v1432 = vsel %vm992, %v1345, 0.0
    %v1433 = vadd.f32 %v1431, %v1432
    %v1434 = vsel %vm992, %v1350, 0.0
    %v1435 = vadd.f32 %v1433, %v1434
    %v1436 = vsel %vm992, %v1355, 0.0
    %v1437 = vadd.f32 %v1435, %v1436
    %v1438 = vsel %vm992, %v1360, 0.0
    %v1439 = vadd.f32 %v1437, %v1438
    %v1440 = vsel %vm992, %v1365, 0.0
    %v1441 = vadd.f32 %v1439, %v1440
    %v1442 = vsel %vm992, %v1370, 0.0
    %v1443 = vadd.f32 %v1441, %v1442
    %v1444 = vsel %vm992, %v1375, 0.0
    %v1445 = vadd.f32 %v1443, %v1444
    %v1446 = vsel %vm992, %v1380, 0.0
    %v1447 = vadd.f32 %v1445, %v1446
    %v1448 = vrot.slane %v1447, 4
    %v1449 = vadd.f32 %v1447, %v1448
    %v1450 = vrot.slane %v1449, 2
    %v1451 = vadd.f32 %v1449, %v1450
    %v1452 = vrot.slane %v1451, 1
    %v1453 = vadd.f32 %v1451, %v1452
    %v1454 = vmul.f32 %v1225, %v1225
    %v1455 = vmul.f32 %v1230, %v1230
    %v1456 = vmul.f32 %v1235, %v1235
    %v1457 = vmul.f32 %v1240, %v1240
    %v1458 = vmul.f32 %v1245, %v1245
    %v1459 = vmul.f32 %v1250, %v1250
    %v1460 = vmul.f32 %v1255, %v1255
    %v1461 = vmul.f32 %v1260, %v1260
    %v1462 = vmul.f32 %v1265, %v1265
    %v1463 = vmul.f32 %v1270, %v1270
    %v1464 = vmul.f32 %v1275, %v1275
    %v1465 = vmul.f32 %v1280, %v1280
    %v1466 = vmul.f32 %v1285, %v1285
    %v1467 = vmul.f32 %v1290, %v1290
    %v1468 = vmul.f32 %v1295, %v1295
    %v1469 = vmul.f32 %v1300, %v1300
    %v1470 = vmul.f32 %v1305, %v1305
    %v1471 = vmul.f32 %v1310, %v1310
    %v1472 = vmul.f32 %v1315, %v1315
    %v1473 = vmul.f32 %v1320, %v1320
    %v1474 = vmul.f32 %v1325, %v1325
    %v1475 = vmul.f32 %v1330, %v1330
    %v1476 = vmul.f32 %v1335, %v1335
    %v1477 = vmul.f32 %v1340, %v1340
    %v1478 = vmul.f32 %v1345, %v1345
    %v1479 = vmul.f32 %v1350, %v1350
    %v1480 = vmul.f32 %v1355, %v1355
    %v1481 = vmul.f32 %v1360, %v1360
    %v1482 = vmul.f32 %v1365, %v1365
    %v1483 = vmul.f32 %v1370, %v1370
    %v1484 = vmul.f32 %v1375, %v1375
    %v1485 = vmul.f32 %v1380, %v1380
    %v1486 = vsel %vm992, %v1454, 0.0
    %v1487 = vsel %vm992, %v1455, 0.0
    %v1488 = vadd.f32 %v1486, %v1487
    %v1489 = vsel %vm992, %v1456, 0.0
    %v1490 = vadd.f32 %v1488, %v1489
    %v1491 = vsel %vm992, %v1457, 0.0
    %v1492 = vadd.f32 %v1490, %v1491
    %v1493 = vsel %vm992, %v1458, 0.0
    %v1494 = vadd.f32 %v1492, %v1493
    %v1495 = vsel %vm992, %v1459, 0.0
    %v1496 = vadd.f32 %v1494, %v1495
    %v1497 = vsel %vm992, %v1460, 0.0
    %v1498 = vadd.f32 %v1496, %v1497
    %v1499 = vsel %vm992, %v1461, 0.0
    %v1500 = vadd.f32 %v1498, %v1499
    %v1501 = vsel %vm992, %v1462, 0.0
    %v1502 = vadd.f32 %v1500, %v1501
    %v1503 = vsel %vm992, %v1463, 0.0
    %v1504 = vadd.f32 %v1502, %v1503
    %v1505 = vsel %vm992, %v1464, 0.0
    %v1506 = vadd.f32 %v1504, %v1505
    %v1507 = vsel %vm992, %v1465, 0.0
    %v1508 = vadd.f32 %v1506, %v1507
    %v1509 = vsel %vm992, %v1466, 0.0
    %v1510 = vadd.f32 %v1508, %v1509
    %v1511 = vsel %vm992, %v1467, 0.0
    %v1512 = vadd.f32 %v1510, %v1511
    %v1513 = vsel %vm992, %v1468, 0.0
    %v1514 = vadd.f32 %v1512, %v1513
    %v1515 = vsel %vm992, %v1469, 0.0
    %v1516 = vadd.f32 %v1514, %v1515
    %v1517 = vsel %vm992, %v1470, 0.0
    %v1518 = vadd.f32 %v1516, %v1517
    %v1519 = vsel %vm992, %v1471, 0.0
    %v1520 = vadd.f32 %v1518, %v1519
    %v1521 = vsel %vm992, %v1472, 0.0
    %v1522 = vadd.f32 %v1520, %v1521
    %v1523 = vsel %vm992, %v1473, 0.0
    %v1524 = vadd.f32 %v1522, %v1523
    %v1525 = vsel %vm992, %v1474, 0.0
    %v1526 = vadd.f32 %v1524, %v1525
    %v1527 = vsel %vm992, %v1475, 0.0
    %v1528 = vadd.f32 %v1526, %v1527
    %v1529 = vsel %vm992, %v1476, 0.0
    %v1530 = vadd.f32 %v1528, %v1529
    %v1531 = vsel %vm992, %v1477, 0.0
    %v1532 = vadd.f32 %v1530, %v1531
    %v1533 = vsel %vm992, %v1478, 0.0
    %v1534 = vadd.f32 %v1532, %v1533
    %v1535 = vsel %vm992, %v1479, 0.0
    %v1536 = vadd.f32 %v1534, %v1535
    %v1537 = vsel %vm992, %v1480, 0.0
    %v1538 = vadd.f32 %v1536, %v1537
    %v1539 = vsel %vm992, %v1481, 0.0
    %v1540 = vadd.f32 %v1538, %v1539
    %v1541 = vsel %vm992, %v1482, 0.0
    %v1542 = vadd.f32 %v1540, %v1541
    %v1543 = vsel %vm992, %v1483, 0.0
    %v1544 = vadd.f32 %v1542, %v1543
    %v1545 = vsel %vm992, %v1484, 0.0
    %v1546 = vadd.f32 %v1544, %v1545
    %v1547 = vsel %vm992, %v1485, 0.0
    %v1548 = vadd.f32 %v1546, %v1547
    %v1549 = vrot.slane %v1548, 4
    %v1550 = vadd.f32 %v1548, %v1549
    %v1551 = vrot.slane %v1550, 2
    %v1552 = vadd.f32 %v1550, %v1551
    %v1553 = vrot.slane %v1552, 1
    %v1554 = vadd.f32 %v1552, %v1553
    %v1555 = vmul.f32 %v1453, 0.00390625
    %v1556 = vmul.f32 %v1554, 0.00390625
    %v1557 = vmul.f32 %v1555, %v1555
    %v1558 = vsub.f32 %v1556, %v1557
    %v1559 = vmax.f32 %v1558, 0.0
    %v1560 = vadd.f32 %v1559, 1e-05
    %v1561 = vrsqrt.pop %v1560
    %v1562 = vmul.f32 %v1383, %v1561
    %v1563 = vmul.f32 %v1555, %v1562
    %v1564 = vsub.f32 %v1384, %v1563
    %v1566 = vlaneseq
    %v1567 = vshrl.u32 %v1566, 7
    %v1568 = vsub.s32 0, %v1567
    %v1569 = vrot.slane %v1562, %v1568
    %v1571 = vmul.f32 %v1225, %v1569
    %v1572 = vmul.f32 %v1230, %v1569
    %v1573 = vmul.f32 %v1235, %v1569
    %v1574 = vmul.f32 %v1240, %v1569
    %v1575 = vmul.f32 %v1245, %v1569
    %v1576 = vmul.f32 %v1250, %v1569
    %v1577 = vmul.f32 %v1255, %v1569
    %v1578 = vmul.f32 %v1260, %v1569
    %v1579 = vmul.f32 %v1265, %v1569
    %v1580 = vmul.f32 %v1270, %v1569
    %v1581 = vmul.f32 %v1275, %v1569
    %v1582 = vmul.f32 %v1280, %v1569
    %v1583 = vmul.f32 %v1285, %v1569
    %v1584 = vmul.f32 %v1290, %v1569
    %v1585 = vmul.f32 %v1295, %v1569
    %v1586 = vmul.f32 %v1300, %v1569
    %v1587 = vmul.f32 %v1305, %v1569
    %v1588 = vmul.f32 %v1310, %v1569
    %v1589 = vmul.f32 %v1315, %v1569
    %v1590 = vmul.f32 %v1320, %v1569
    %v1591 = vmul.f32 %v1325, %v1569
    %v1592 = vmul.f32 %v1330, %v1569
    %v1593 = vmul.f32 %v1335, %v1569
    %v1594 = vmul.f32 %v1340, %v1569
    %v1595 = vmul.f32 %v1345, %v1569
    %v1596 = vmul.f32 %v1350, %v1569
    %v1597 = vmul.f32 %v1355, %v1569
    %v1598 = vmul.f32 %v1360, %v1569
    %v1599 = vmul.f32 %v1365, %v1569
    %v1600 = vmul.f32 %v1370, %v1569
    %v1601 = vmul.f32 %v1375, %v1569
    %v1602 = vmul.f32 %v1380, %v1569
    %v1604 = vlaneseq
    %v1605 = vshrl.u32 %v1604, 7
    %v1606 = vsub.s32 0, %v1605
    %v1607 = vrot.slane %v1564, %v1606
    %v1609 = vadd.f32 %v1571, %v1607
    %v1610 = vadd.f32 %v1572, %v1607
    %v1611 = vadd.f32 %v1573, %v1607
    %v1612 = vadd.f32 %v1574, %v1607
    %v1613 = vadd.f32 %v1575, %v1607
    %v1614 = vadd.f32 %v1576, %v1607
    %v1615 = vadd.f32 %v1577, %v1607
    %v1616 = vadd.f32 %v1578, %v1607
    %v1617 = vadd.f32 %v1579, %v1607
    %v1618 = vadd.f32 %v1580, %v1607
    %v1619 = vadd.f32 %v1581, %v1607
    %v1620 = vadd.f32 %v1582, %v1607
    %v1621 = vadd.f32 %v1583, %v1607
    %v1622 = vadd.f32 %v1584, %v1607
    %v1623 = vadd.f32 %v1585, %v1607
    %v1624 = vadd.f32 %v1586, %v1607
    %v1625 = vadd.f32 %v1587, %v1607
    %v1626 = vadd.f32 %v1588, %v1607
    %v1627 = vadd.f32 %v1589, %v1607
    %v1628 = vadd.f32 %v1590, %v1607
    %v1629 = vadd.f32 %v1591, %v1607
    %v1630 = vadd.f32 %v1592, %v1607
    %v1631 = vadd.f32 %v1593, %v1607
    %v1632 = vadd.f32 %v1594, %v1607
    %v1633 = vadd.f32 %v1595, %v1607
    %v1634 = vadd.f32 %v1596, %v1607
    %v1635 = vadd.f32 %v1597, %v1607
    %v1636 = vadd.f32 %v1598, %v1607
    %v1637 = vadd.f32 %v1599, %v1607
    %v1638 = vadd.f32 %v1600, %v1607
    %v1639 = vadd.f32 %v1601, %v1607
    %v1640 = vadd.f32 %v1602, %v1607
    %v1641 = vmax.f32 %v1609, 0.0
    %v1642 = vmax.f32 %v1610, 0.0
    %v1643 = vmax.f32 %v1611, 0.0
    %v1644 = vmax.f32 %v1612, 0.0
    %v1645 = vmax.f32 %v1613, 0.0
    %v1646 = vmax.f32 %v1614, 0.0
    %v1647 = vmax.f32 %v1615, 0.0
    %v1648 = vmax.f32 %v1616, 0.0
    %v1649 = vmax.f32 %v1617, 0.0
    %v1650 = vmax.f32 %v1618, 0.0
    %v1651 = vmax.f32 %v1619, 0.0
    %v1652 = vmax.f32 %v1620, 0.0
    %v1653 = vmax.f32 %v1621, 0.0
    %v1654 = vmax.f32 %v1622, 0.0
    %v1655 = vmax.f32 %v1623, 0.0
    %v1656 = vmax.f32 %v1624, 0.0
    %v1657 = vmax.f32 %v1625, 0.0
    %v1658 = vmax.f32 %v1626, 0.0
    %v1659 = vmax.f32 %v1627, 0.0
    %v1660 = vmax.f32 %v1628, 0.0
    %v1661 = vmax.f32 %v1629, 0.0
    %v1662 = vmax.f32 %v1630, 0.0
    %v1663 = vmax.f32 %v1631, 0.0
    %v1664 = vmax.f32 %v1632, 0.0
    %v1665 = vmax.f32 %v1633, 0.0
    %v1666 = vmax.f32 %v1634, 0.0
    %v1667 = vmax.f32 %v1635, 0.0
    %v1668 = vmax.f32 %v1636, 0.0
    %v1669 = vmax.f32 %v1637, 0.0
    %v1670 = vmax.f32 %v1638, 0.0
    %v1671 = vmax.f32 %v1639, 0.0
    %v1672 = vmax.f32 %v1640, 0.0
    %v1673 = vrot.slane %v1641, 7
    %v1674 = vrot.slane %v1642, 7
    %v1675 = vrot.slane %v1643, 7
    %v1676 = vrot.slane %v1644, 7
    %v1677 = vrot.slane %v1645, 7
    %v1678 = vrot.slane %v1646, 7
    %v1679 = vrot.slane %v1647, 7
    %v1680 = vrot.slane %v1648, 7
    %v1681 = vrot.slane %v1649, 7
    %v1682 = vrot.slane %v1650, 7
    %v1683 = vrot.slane %v1651, 7
    %v1684 = vrot.slane %v1652, 7
    %v1685 = vrot.slane %v1653, 7
    %v1686 = vrot.slane %v1654, 7
    %v1687 = vrot.slane %v1655, 7
    %v1688 = vrot.slane %v1656, 7
    %v1689 = vrot.slane %v1657, 7
    %v1690 = vrot.slane %v1658, 7
    %v1691 = vrot.slane %v1659, 7
    %v1692 = vrot.slane %v1660, 7
    %v1693 = vrot.slane %v1661, 7
    %v1694 = vrot.slane %v1662, 7
    %v1695 = vrot.slane %v1663, 7
    %v1696 = vrot.slane %v1664, 7
    %v1697 = vrot.slane %v1665, 7
    %v1698 = vrot.slane %v1666, 7
    %v1699 = vrot.slane %v1667, 7
    %v1700 = vrot.slane %v1668, 7
    %v1701 = vrot.slane %v1669, 7
    %v1702 = vrot.slane %v1670, 7
    %v1703 = vrot.slane %v1671, 7
    %v1704 = vrot.slane %v1672, 7
    %v1705 = vsel %vm446, %v1703, %v1704
    %v1706 = vsel %vm446, %v1702, %v1703
    %v1707 = vsel %vm446, %v1701, %v1702
    %v1708 = vsel %vm446, %v1700, %v1701
    %v1709 = vsel %vm446, %v1699, %v1700
    %v1710 = vsel %vm446, %v1698, %v1699
    %v1711 = vsel %vm446, %v1697, %v1698
    %v1712 = vsel %vm446, %v1696, %v1697
    %v1713 = vsel %vm446, %v1695, %v1696
    %v1714 = vsel %vm446, %v1694, %v1695
    %v1715 = vsel %vm446, %v1693, %v1694
    %v1716 = vsel %vm446, %v1692, %v1693
    %v1717 = vsel %vm446, %v1691, %v1692
    %v1718 = vsel %vm446, %v1690, %v1691
    %v1719 = vsel %vm446, %v1689, %v1690
    %v1720 = vsel %vm446, %v1688, %v1689
    %v1721 = vsel %vm446, %v1687, %v1688
    %v1722 = vsel %vm446, %v1686, %v1687
    %v1723 = vsel %vm446, %v1685, %v1686
    %v1724 = vsel %vm446, %v1684, %v1685
    %v1725 = vsel %vm446, %v1683, %v1684
    %v1726 = vsel %vm446, %v1682, %v1683
    %v1727 = vsel %vm446, %v1681, %v1682
    %v1728 = vsel %vm446, %v1680, %v1681
    %v1729 = vsel %vm446, %v1679, %v1680
    %v1730 = vsel %vm446, %v1678, %v1679
    %v1731 = vsel %vm446, %v1677, %v1678
    %v1732 = vsel %vm446, %v1676, %v1677
    %v1733 = vsel %vm446, %v1675, %v1676
    %v1734 = vsel %vm446, %v1674, %v1675
    %v1735 = vsel %vm446, %v1673, %v1674
    %v1736 = vsel %vm446, %v1704, %v1673
    %v1737 = vsel %vm511, %v1736, 0.0
    %v1738 = vsel %vm512, %v1735, 0.0
    %v1739 = vsel %vm513, %v1734, 0.0
    %v1740 = vsel %vm514, %v1733, 0.0
    %v1741 = vsel %vm515, %v1732, 0.0
    %v1742 = vsel %vm516, %v1731, 0.0
    %v1743 = vsel %vm517, %v1730, 0.0
    %v1744 = vsel %vm518, %v1729, 0.0
    %v1745 = vsel %vm519, %v1728, 0.0
    %v1746 = vsel %vm520, %v1727, 0.0
    %v1747 = vsel %vm521, %v1726, 0.0
    %v1748 = vsel %vm522, %v1725, 0.0
    %v1749 = vsel %vm523, %v1724, 0.0
    %v1750 = vsel %vm524, %v1723, 0.0
    %v1751 = vsel %vm525, %v1722, 0.0
    %v1752 = vsel %vm526, %v1721, 0.0
    %v1753 = vsel %vm527, %v1720, 0.0
    %v1754 = vsel %vm528, %v1719, 0.0
    %v1755 = vsel %vm529, %v1718, 0.0
    %v1756 = vsel %vm530, %v1717, 0.0
    %v1757 = vsel %vm531, %v1716, 0.0
    %v1758 = vsel %vm532, %v1715, 0.0
    %v1759 = vsel %vm533, %v1714, 0.0
    %v1760 = vsel %vm534, %v1713, 0.0
    %v1761 = vsel %vm535, %v1712, 0.0
    %v1762 = vsel %vm536, %v1711, 0.0
    %v1763 = vsel %vm537, %v1710, 0.0
    %v1764 = vsel %vm538, %v1709, 0.0
    %v1765 = vsel %vm539, %v1708, 0.0
    %v1766 = vsel %vm540, %v1707, 0.0
    %v1767 = vsel %vm541, %v1706, 0.0
    %v1768 = vsel %vm542, %v1705, 0.0
    %v1769 = vrot.slane %v1641, 1
    %v1770 = vrot.slane %v1642, 1
    %v1771 = vrot.slane %v1643, 1
    %v1772 = vrot.slane %v1644, 1
    %v1773 = vrot.slane %v1645, 1
    %v1774 = vrot.slane %v1646, 1
    %v1775 = vrot.slane %v1647, 1
    %v1776 = vrot.slane %v1648, 1
    %v1777 = vrot.slane %v1649, 1
    %v1778 = vrot.slane %v1650, 1
    %v1779 = vrot.slane %v1651, 1
    %v1780 = vrot.slane %v1652, 1
    %v1781 = vrot.slane %v1653, 1
    %v1782 = vrot.slane %v1654, 1
    %v1783 = vrot.slane %v1655, 1
    %v1784 = vrot.slane %v1656, 1
    %v1785 = vrot.slane %v1657, 1
    %v1786 = vrot.slane %v1658, 1
    %v1787 = vrot.slane %v1659, 1
    %v1788 = vrot.slane %v1660, 1
    %v1789 = vrot.slane %v1661, 1
    %v1790 = vrot.slane %v1662, 1
    %v1791 = vrot.slane %v1663, 1
    %v1792 = vrot.slane %v1664, 1
    %v1793 = vrot.slane %v1665, 1
    %v1794 = vrot.slane %v1666, 1
    %v1795 = vrot.slane %v1667, 1
    %v1796 = vrot.slane %v1668, 1
    %v1797 = vrot.slane %v1669, 1
    %v1798 = vrot.slane %v1670, 1
    %v1799 = vrot.slane %v1671, 1
    %v1800 = vrot.slane %v1672, 1
    %v1801 = vsel %vm607, %v1799, %v1800
    %v1802 = vsel %vm607, %v1798, %v1799
    %v1803 = vsel %vm607, %v1797, %v1798
    %v1804 = vsel %vm607, %v1796, %v1797
    %v1805 = vsel %vm607, %v1795, %v1796
    %v1806 = vsel %vm607, %v1794, %v1795
    %v1807 = vsel %vm607, %v1793, %v1794
    %v1808 = vsel %vm607, %v1792, %v1793
    %v1809 = vsel %vm607, %v1791, %v1792
    %v1810 = vsel %vm607, %v1790, %v1791
    %v1811 = vsel %vm607, %v1789, %v1790
    %v1812 = vsel %vm607, %v1788, %v1789
    %v1813 = vsel %vm607, %v1787, %v1788
    %v1814 = vsel %vm607, %v1786, %v1787
    %v1815 = vsel %vm607, %v1785, %v1786
    %v1816 = vsel %vm607, %v1784, %v1785
    %v1817 = vsel %vm607, %v1783, %v1784
    %v1818 = vsel %vm607, %v1782, %v1783
    %v1819 = vsel %vm607, %v1781, %v1782
    %v1820 = vsel %vm607, %v1780, %v1781
    %v1821 = vsel %vm607, %v1779, %v1780
    %v1822 = vsel %vm607, %v1778, %v1779
    %v1823 = vsel %vm607, %v1777, %v1778
    %v1824 = vsel %vm607, %v1776, %v1777
    %v1825 = vsel %vm607, %v1775, %v1776
    %v1826 = vsel %vm607, %v1774, %v1775
    %v1827 = vsel %vm607, %v1773, %v1774
    %v1828 = vsel %vm607, %v1772, %v1773
    %v1829 = vsel %vm607, %v1771, %v1772
    %v1830 = vsel %vm607, %v1770, %v1771
    %v1831 = vsel %vm607, %v1769, %v1770
    %v1832 = vsel %vm607, %v1800, %v1769
    %v1833 = vsel %vm672, %v1831, 0.0
    %v1834 = vsel %vm673, %v1830, 0.0
    %v1835 = vsel %vm674, %v1829, 0.0
    %v1836 = vsel %vm675, %v1828, 0.0
    %v1837 = vsel %vm676, %v1827, 0.0
    %v1838 = vsel %vm677, %v1826, 0.0
    %v1839 = vsel %vm678, %v1825, 0.0
    %v1840 = vsel %vm679, %v1824, 0.0
    %v1841 = vsel %vm680, %v1823, 0.0
    %v1842 = vsel %vm681, %v1822, 0.0
    %v1843 = vsel %vm682, %v1821, 0.0
    %v1844 = vsel %vm683, %v1820, 0.0
    %v1845 = vsel %vm684, %v1819, 0.0
    %v1846 = vsel %vm685, %v1818, 0.0
    %v1847 = vsel %vm686, %v1817, 0.0
    %v1848 = vsel %vm687, %v1816, 0.0
    %v1849 = vsel %vm688, %v1815, 0.0
    %v1850 = vsel %vm689, %v1814, 0.0
    %v1851 = vsel %vm690, %v1813, 0.0
    %v1852 = vsel %vm691, %v1812, 0.0
    %v1853 = vsel %vm692, %v1811, 0.0
    %v1854 = vsel %vm693, %v1810, 0.0
    %v1855 = vsel %vm694, %v1809, 0.0
    %v1856 = vsel %vm695, %v1808, 0.0
    %v1857 = vsel %vm696, %v1807, 0.0
    %v1858 = vsel %vm697, %v1806, 0.0
    %v1859 = vsel %vm698, %v1805, 0.0
    %v1860 = vsel %vm699, %v1804, 0.0
    %v1861 = vsel %vm700, %v1803, 0.0
    %v1862 = vsel %vm701, %v1802, 0.0
    %v1863 = vsel %vm702, %v1801, 0.0
    %v1864 = vsel %vm703, %v1832, 0.0
    %1897 = vrot.lane.b32.xlu0 %v1641, 8
    %v1898 = vpop.permute.xlu0 %1897
    %1899 = vrot.lane.b32.xlu0 %v1642, 8
    %v1900 = vpop.permute.xlu0 %1899
    %1901 = vrot.lane.b32.xlu0 %v1643, 8
    %v1902 = vpop.permute.xlu0 %1901
    %1903 = vrot.lane.b32.xlu0 %v1644, 8
    %v1904 = vpop.permute.xlu0 %1903
    %1905 = vrot.lane.b32.xlu0 %v1645, 8
    %v1906 = vpop.permute.xlu0 %1905
    %1907 = vrot.lane.b32.xlu0 %v1646, 8
    %v1908 = vpop.permute.xlu0 %1907
    %1909 = vrot.lane.b32.xlu0 %v1647, 8
    %v1910 = vpop.permute.xlu0 %1909
    %1911 = vrot.lane.b32.xlu0 %v1648, 8
    %v1912 = vpop.permute.xlu0 %1911
    %1913 = vrot.lane.b32.xlu0 %v1649, 8
    %v1914 = vpop.permute.xlu0 %1913
    %1915 = vrot.lane.b32.xlu0 %v1650, 8
    %v1916 = vpop.permute.xlu0 %1915
    %1917 = vrot.lane.b32.xlu0 %v1651, 8
    %v1918 = vpop.permute.xlu0 %1917
    %1919 = vrot.lane.b32.xlu0 %v1652, 8
    %v1920 = vpop.permute.xlu0 %1919
    %1921 = vrot.lane.b32.xlu0 %v1653, 8
    %v1922 = vpop.permute.xlu0 %1921
    %1923 = vrot.lane.b32.xlu0 %v1654, 8
    %v1924 = vpop.permute.xlu0 %1923
    %1925 = vrot.lane.b32.xlu0 %v1655, 8
    %v1926 = vpop.permute.xlu0 %1925
    %1927 = vrot.lane.b32.xlu0 %v1656, 8
    %v1928 = vpop.permute.xlu0 %1927
    %1929 = vrot.lane.b32.xlu0 %v1657, 8
    %v1930 = vpop.permute.xlu0 %1929
    %1931 = vrot.lane.b32.xlu0 %v1658, 8
    %v1932 = vpop.permute.xlu0 %1931
    %1933 = vrot.lane.b32.xlu0 %v1659, 8
    %v1934 = vpop.permute.xlu0 %1933
    %1935 = vrot.lane.b32.xlu0 %v1660, 8
    %v1936 = vpop.permute.xlu0 %1935
    %1937 = vrot.lane.b32.xlu0 %v1661, 8
    %v1938 = vpop.permute.xlu0 %1937
    %1939 = vrot.lane.b32.xlu0 %v1662, 8
    %v1940 = vpop.permute.xlu0 %1939
    %1941 = vrot.lane.b32.xlu0 %v1663, 8
    %v1942 = vpop.permute.xlu0 %1941
    %1943 = vrot.lane.b32.xlu0 %v1664, 8
    %v1944 = vpop.permute.xlu0 %1943
    %1945 = vrot.lane.b32.xlu0 %v1665, 8
    %v1946 = vpop.permute.xlu0 %1945
    %1947 = vrot.lane.b32.xlu0 %v1666, 8
    %v1948 = vpop.permute.xlu0 %1947
    %1949 = vrot.lane.b32.xlu0 %v1667, 8
    %v1950 = vpop.permute.xlu0 %1949
    %1951 = vrot.lane.b32.xlu0 %v1668, 8
    %v1952 = vpop.permute.xlu0 %1951
    %1953 = vrot.lane.b32.xlu0 %v1669, 8
    %v1954 = vpop.permute.xlu0 %1953
    %1955 = vrot.lane.b32.xlu0 %v1670, 8
    %v1956 = vpop.permute.xlu0 %1955
    %1957 = vrot.lane.b32.xlu0 %v1671, 8
    %v1958 = vpop.permute.xlu0 %1957
    %1959 = vrot.lane.b32.xlu0 %v1672, 8
    %v1960 = vpop.permute.xlu0 %1959
    %2025 = vrot.lane.b32.xlu0 %v1833, 16
    %v2026 = vpop.permute.xlu0 %2025
    %2027 = vrot.lane.b32.xlu0 %v1834, 16
    %v2028 = vpop.permute.xlu0 %2027
    %2029 = vrot.lane.b32.xlu0 %v1835, 16
    %v2030 = vpop.permute.xlu0 %2029
    %2031 = vrot.lane.b32.xlu0 %v1836, 16
    %v2032 = vpop.permute.xlu0 %2031
    %2033 = vrot.lane.b32.xlu0 %v1837, 16
    %v2034 = vpop.permute.xlu0 %2033
    %2035 = vrot.lane.b32.xlu0 %v1838, 16
    %v2036 = vpop.permute.xlu0 %2035
    %2037 = vrot.lane.b32.xlu0 %v1839, 16
    %v2038 = vpop.permute.xlu0 %2037
    %2039 = vrot.lane.b32.xlu0 %v1840, 16
    %v2040 = vpop.permute.xlu0 %2039
    %2041 = vrot.lane.b32.xlu0 %v1841, 16
    %v2042 = vpop.permute.xlu0 %2041
    %2043 = vrot.lane.b32.xlu0 %v1842, 16
    %v2044 = vpop.permute.xlu0 %2043
    %2045 = vrot.lane.b32.xlu0 %v1843, 16
    %v2046 = vpop.permute.xlu0 %2045
    %2047 = vrot.lane.b32.xlu0 %v1844, 16
    %v2048 = vpop.permute.xlu0 %2047
    %2049 = vrot.lane.b32.xlu0 %v1845, 16
    %v2050 = vpop.permute.xlu0 %2049
    %2051 = vrot.lane.b32.xlu0 %v1846, 16
    %v2052 = vpop.permute.xlu0 %2051
    %2053 = vrot.lane.b32.xlu0 %v1847, 16
    %v2054 = vpop.permute.xlu0 %2053
    %2055 = vrot.lane.b32.xlu0 %v1848, 16
    %v2056 = vpop.permute.xlu0 %2055
    %2057 = vrot.lane.b32.xlu0 %v1849, 16
    %v2058 = vpop.permute.xlu0 %2057
    %2059 = vrot.lane.b32.xlu0 %v1850, 16
    %v2060 = vpop.permute.xlu0 %2059
    %2061 = vrot.lane.b32.xlu0 %v1851, 16
    %v2062 = vpop.permute.xlu0 %2061
    %2063 = vrot.lane.b32.xlu0 %v1852, 16
    %v2064 = vpop.permute.xlu0 %2063
    %2065 = vrot.lane.b32.xlu0 %v1853, 16
    %v2066 = vpop.permute.xlu0 %2065
    %2067 = vrot.lane.b32.xlu0 %v1854, 16
    %v2068 = vpop.permute.xlu0 %2067
    %2069 = vrot.lane.b32.xlu0 %v1855, 16
    %v2070 = vpop.permute.xlu0 %2069
    %2071 = vrot.lane.b32.xlu0 %v1856, 16
    %v2072 = vpop.permute.xlu0 %2071
    %2073 = vrot.lane.b32.xlu0 %v1857, 16
    %v2074 = vpop.permute.xlu0 %2073
    %2075 = vrot.lane.b32.xlu0 %v1858, 16
    %v2076 = vpop.permute.xlu0 %2075
    %2077 = vrot.lane.b32.xlu0 %v1859, 16
    %v2078 = vpop.permute.xlu0 %2077
    %2079 = vrot.lane.b32.xlu0 %v1860, 16
    %v2080 = vpop.permute.xlu0 %2079
    %2081 = vrot.lane.b32.xlu0 %v1861, 16
    %v2082 = vpop.permute.xlu0 %2081
    %2083 = vrot.lane.b32.xlu0 %v1862, 16
    %v2084 = vpop.permute.xlu0 %2083
    %2085 = vrot.lane.b32.xlu0 %v1863, 16
    %v2086 = vpop.permute.xlu0 %2085
    %2087 = vrot.lane.b32.xlu0 %v1864, 16
    %v2088 = vpop.permute.xlu0 %2087
    %v2121 = vsel %vm992, %v1737, %v1898
    %v2122 = vsel %vm992, %v1738, %v1900
    %v2123 = vsel %vm992, %v1739, %v1902
    %v2124 = vsel %vm992, %v1740, %v1904
    %v2125 = vsel %vm992, %v1741, %v1906
    %v2126 = vsel %vm992, %v1742, %v1908
    %v2127 = vsel %vm992, %v1743, %v1910
    %v2128 = vsel %vm992, %v1744, %v1912
    %v2129 = vsel %vm992, %v1745, %v1914
    %v2130 = vsel %vm992, %v1746, %v1916
    %v2131 = vsel %vm992, %v1747, %v1918
    %v2132 = vsel %vm992, %v1748, %v1920
    %v2133 = vsel %vm992, %v1749, %v1922
    %v2134 = vsel %vm992, %v1750, %v1924
    %v2135 = vsel %vm992, %v1751, %v1926
    %v2136 = vsel %vm992, %v1752, %v1928
    %v2137 = vsel %vm992, %v1753, %v1930
    %v2138 = vsel %vm992, %v1754, %v1932
    %v2139 = vsel %vm992, %v1755, %v1934
    %v2140 = vsel %vm992, %v1756, %v1936
    %v2141 = vsel %vm992, %v1757, %v1938
    %v2142 = vsel %vm992, %v1758, %v1940
    %v2143 = vsel %vm992, %v1759, %v1942
    %v2144 = vsel %vm992, %v1760, %v1944
    %v2145 = vsel %vm992, %v1761, %v1946
    %v2146 = vsel %vm992, %v1762, %v1948
    %v2147 = vsel %vm992, %v1763, %v1950
    %v2148 = vsel %vm992, %v1764, %v1952
    %v2149 = vsel %vm992, %v1765, %v1954
    %v2150 = vsel %vm992, %v1766, %v1956
    %v2151 = vsel %vm992, %v1767, %v1958
    %v2152 = vsel %vm992, %v1768, %v1960
    %v2153 = vsel %vm1025, %v2121, %v2026
    %v2154 = vsel %vm1025, %v2122, %v2028
    %v2155 = vsel %vm1025, %v2123, %v2030
    %v2156 = vsel %vm1025, %v2124, %v2032
    %v2157 = vsel %vm1025, %v2125, %v2034
    %v2158 = vsel %vm1025, %v2126, %v2036
    %v2159 = vsel %vm1025, %v2127, %v2038
    %v2160 = vsel %vm1025, %v2128, %v2040
    %v2161 = vsel %vm1025, %v2129, %v2042
    %v2162 = vsel %vm1025, %v2130, %v2044
    %v2163 = vsel %vm1025, %v2131, %v2046
    %v2164 = vsel %vm1025, %v2132, %v2048
    %v2165 = vsel %vm1025, %v2133, %v2050
    %v2166 = vsel %vm1025, %v2134, %v2052
    %v2167 = vsel %vm1025, %v2135, %v2054
    %v2168 = vsel %vm1025, %v2136, %v2056
    %v2169 = vsel %vm1025, %v2137, %v2058
    %v2170 = vsel %vm1025, %v2138, %v2060
    %v2171 = vsel %vm1025, %v2139, %v2062
    %v2172 = vsel %vm1025, %v2140, %v2064
    %v2173 = vsel %vm1025, %v2141, %v2066
    %v2174 = vsel %vm1025, %v2142, %v2068
    %v2175 = vsel %vm1025, %v2143, %v2070
    %v2176 = vsel %vm1025, %v2144, %v2072
    %v2177 = vsel %vm1025, %v2145, %v2074
    %v2178 = vsel %vm1025, %v2146, %v2076
    %v2179 = vsel %vm1025, %v2147, %v2078
    %v2180 = vsel %vm1025, %v2148, %v2080
    %v2181 = vsel %vm1025, %v2149, %v2082
    %v2182 = vsel %vm1025, %v2150, %v2084
    %v2183 = vsel %vm1025, %v2151, %v2086
    %v2184 = vsel %vm1025, %v2152, %v2088
    %v2185 = vld [vmem:[%s2] sm:$0xff]
    %v2186 = vld [vmem:[%s2 + $0x8] sm:$0xff]
    %v2187 = vld [vmem:[%s2 + $0x10] sm:$0xff]
    %v2189 = vsel %vm1061, %v2153, 0
    %v2192 = vsel %vm1061, %v2154, 0
    %v2195 = vsel %vm1061, %v2155, 0
    %v2198 = vsel %vm1061, %v2156, 0
    %v2201 = vsel %vm1061, %v2157, 0
    %v2204 = vsel %vm1061, %v2158, 0
    %v2207 = vsel %vm1061, %v2159, 0
    %v2210 = vsel %vm1061, %v2160, 0
    %v2213 = vsel %vm1061, %v2161, 0
    %v2216 = vsel %vm1061, %v2162, 0
    %v2219 = vsel %vm1061, %v2163, 0
    %v2222 = vsel %vm1061, %v2164, 0
    %v2225 = vsel %vm1061, %v2165, 0
    %v2228 = vsel %vm1061, %v2166, 0
    %v2231 = vsel %vm1061, %v2167, 0
    %v2234 = vsel %vm1061, %v2168, 0
    %v2237 = vsel %vm1061, %v2169, 0
    %v2240 = vsel %vm1061, %v2170, 0
    %v2243 = vsel %vm1061, %v2171, 0
    %v2246 = vsel %vm1061, %v2172, 0
    %v2249 = vsel %vm1061, %v2173, 0
    %v2252 = vsel %vm1061, %v2174, 0
    %v2255 = vsel %vm1061, %v2175, 0
    %v2258 = vsel %vm1061, %v2176, 0
    %v2261 = vsel %vm1061, %v2177, 0
    %v2264 = vsel %vm1061, %v2178, 0
    %v2267 = vsel %vm1061, %v2179, 0
    %v2270 = vsel %vm1061, %v2180, 0
    %v2273 = vsel %vm1061, %v2181, 0
    %v2276 = vsel %vm1061, %v2182, 0
    %v2279 = vsel %vm1061, %v2183, 0
    %v2282 = vsel %vm1061, %v2184, 0
    %2284 = vmatprep.subr.mxu0 0.0
    %2285 = vmatpush1.msra.mxu0 0.0
    %2286 = vmatprep.subr.mxu0 0.0
    %2287 = vmatpush1.msra.mxu0 0.0
    %2288 = vmatprep.subr.mxu0 0.0
    %2289 = vmatpush1.msra.mxu0 0.0
    %2290 = vmatprep.subr.mxu0 0.0
    %2291 = vmatpush1.msra.mxu0 0.0
    %2292 = vmatprep.subr.mxu0 0.0
    %2293 = vmatpush1.msra.mxu0 0.0
    %2294 = vmatprep.subr.mxu0 0.0
    %2295 = vmatpush1.msra.mxu0 0.0
    %2296 = vmatprep.subr.mxu0 0.0
    %2297 = vmatpush1.msra.mxu0 0.0
    %2298 = vmatprep.subr.mxu0 0.0
    %2299 = vmatpush1.msra.mxu0 0.0
    %2300 = vmatprep.subr.mxu0 0.0
    %2301 = vmatpush1.msra.mxu0 0.0
    %2302 = vmatprep.subr.mxu0 0.0
    %2303 = vmatpush1.msra.mxu0 0.0
    %2304 = vmatprep.subr.mxu0 0.0
    %2305 = vmatpush1.msra.mxu0 0.0
    %2306 = vmatprep.subr.mxu0 0.0
    %2307 = vmatpush1.msra.mxu0 0.0
    %2308 = vmatprep.subr.mxu0 0.0
    %2309 = vmatpush1.msra.mxu0 0.0
    %2310 = vmatprep.subr.mxu0 0.0
    %2311 = vmatpush1.msra.mxu0 %v2187
    %2312 = vmatprep.subr.mxu0 0.0
    %2313 = vmatpush1.msra.mxu0 %v2186
    %2314 = vmatprep.subr.mxu0 0.0
    %2315 = vmatpush1.msra.mxu0 %v2185
    %2316 = vmatprep.subr.mxu0 0.0
    %2317 = vmatpush2.msra.mxu0 0.0
    %2318 = vmatprep.subr.mxu0 0.0
    %2319 = vmatpush2.msra.mxu0 0.0
    %2320 = vmatprep.subr.mxu0 0.0
    %2321 = vmatpush2.msra.mxu0 0.0
    %2322 = vmatprep.subr.mxu0 0.0
    %2323 = vmatpush2.msra.mxu0 0.0
    %2324 = vmatprep.subr.mxu0 0.0
    %2325 = vmatpush2.msra.mxu0 0.0
    %2326 = vmatprep.subr.mxu0 0.0
    %2327 = vmatpush2.msra.mxu0 0.0
    %2328 = vmatprep.subr.mxu0 0.0
    %2329 = vmatpush2.msra.mxu0 0.0
    %2330 = vmatprep.subr.mxu0 0.0
    %2331 = vmatpush2.msra.mxu0 0.0
    %2332 = vmatprep.subr.mxu0 0.0
    %2333 = vmatpush2.msra.mxu0 0.0
    %2334 = vmatprep.subr.mxu0 0.0
    %2335 = vmatpush2.msra.mxu0 0.0
    %2336 = vmatprep.subr.mxu0 0.0
    %2337 = vmatpush2.msra.mxu0 0.0
    %2338 = vmatprep.subr.mxu0 0.0
    %2339 = vmatpush2.msra.mxu0 0.0
    %2340 = vmatprep.subr.mxu0 0.0
    %2341 = vmatpush2.msra.mxu0 0.0
    %2342 = vmatprep.subr.mxu0 0.0
    %2343 = vmatpush2.msra.mxu0 0.0
    %2344 = vmatprep.subr.mxu0 0.0
    %2345 = vmatpush2.msra.mxu0 0.0
    %2346 = vmatprep.subr.mxu0 0.0
    %2347 = vmatpush2.msra.mxu0 0.0
    %2348 = vmatprep.mubr.f32.mxu0 0.0
    %2349 = vmatmul.mubr.f32.gmra.mxu0 %v2189
    %v2350 = vpop.f32.mrf.mxu0
    %v2351 = vadd.f32 0.0, %v2350
    %v2352 = vpop.f32.mrf.mxu0
    %2353 = vmatprep.mubr.f32.mxu0 0.0
    %2354 = vmatmul.mubr.f32.gmra.mxu0 %v2192
    %v2355 = vpop.f32.mrf.mxu0
    %v2356 = vadd.f32 0.0, %v2355
    %v2357 = vpop.f32.mrf.mxu0
    %2358 = vmatprep.mubr.f32.mxu0 0.0
    %2359 = vmatmul.mubr.f32.gmra.mxu0 %v2195
    %v2360 = vpop.f32.mrf.mxu0
    %v2361 = vadd.f32 0.0, %v2360
    %v2362 = vpop.f32.mrf.mxu0
    %2363 = vmatprep.mubr.f32.mxu0 0.0
    %2364 = vmatmul.mubr.f32.gmra.mxu0 %v2198
    %v2365 = vpop.f32.mrf.mxu0
    %v2366 = vadd.f32 0.0, %v2365
    %v2367 = vpop.f32.mrf.mxu0
    %2368 = vmatprep.mubr.f32.mxu0 0.0
    %2369 = vmatmul.mubr.f32.gmra.mxu0 %v2201
    %v2370 = vpop.f32.mrf.mxu0
    %v2371 = vadd.f32 0.0, %v2370
    %v2372 = vpop.f32.mrf.mxu0
    %2373 = vmatprep.mubr.f32.mxu0 0.0
    %2374 = vmatmul.mubr.f32.gmra.mxu0 %v2204
    %v2375 = vpop.f32.mrf.mxu0
    %v2376 = vadd.f32 0.0, %v2375
    %v2377 = vpop.f32.mrf.mxu0
    %2378 = vmatprep.mubr.f32.mxu0 0.0
    %2379 = vmatmul.mubr.f32.gmra.mxu0 %v2207
    %v2380 = vpop.f32.mrf.mxu0
    %v2381 = vadd.f32 0.0, %v2380
    %v2382 = vpop.f32.mrf.mxu0
    %2383 = vmatprep.mubr.f32.mxu0 0.0
    %2384 = vmatmul.mubr.f32.gmra.mxu0 %v2210
    %v2385 = vpop.f32.mrf.mxu0
    %v2386 = vadd.f32 0.0, %v2385
    %v2387 = vpop.f32.mrf.mxu0
    %2388 = vmatprep.mubr.f32.mxu0 0.0
    %2389 = vmatmul.mubr.f32.gmra.mxu0 %v2213
    %v2390 = vpop.f32.mrf.mxu0
    %v2391 = vadd.f32 0.0, %v2390
    %v2392 = vpop.f32.mrf.mxu0
    %2393 = vmatprep.mubr.f32.mxu0 0.0
    %2394 = vmatmul.mubr.f32.gmra.mxu0 %v2216
    %v2395 = vpop.f32.mrf.mxu0
    %v2396 = vadd.f32 0.0, %v2395
    %v2397 = vpop.f32.mrf.mxu0
    %2398 = vmatprep.mubr.f32.mxu0 0.0
    %2399 = vmatmul.mubr.f32.gmra.mxu0 %v2219
    %v2400 = vpop.f32.mrf.mxu0
    %v2401 = vadd.f32 0.0, %v2400
    %v2402 = vpop.f32.mrf.mxu0
    %2403 = vmatprep.mubr.f32.mxu0 0.0
    %2404 = vmatmul.mubr.f32.gmra.mxu0 %v2222
    %v2405 = vpop.f32.mrf.mxu0
    %v2406 = vadd.f32 0.0, %v2405
    %v2407 = vpop.f32.mrf.mxu0
    %2408 = vmatprep.mubr.f32.mxu0 0.0
    %2409 = vmatmul.mubr.f32.gmra.mxu0 %v2225
    %v2410 = vpop.f32.mrf.mxu0
    %v2411 = vadd.f32 0.0, %v2410
    %v2412 = vpop.f32.mrf.mxu0
    %2413 = vmatprep.mubr.f32.mxu0 0.0
    %2414 = vmatmul.mubr.f32.gmra.mxu0 %v2228
    %v2415 = vpop.f32.mrf.mxu0
    %v2416 = vadd.f32 0.0, %v2415
    %v2417 = vpop.f32.mrf.mxu0
    %2418 = vmatprep.mubr.f32.mxu0 0.0
    %2419 = vmatmul.mubr.f32.gmra.mxu0 %v2231
    %v2420 = vpop.f32.mrf.mxu0
    %v2421 = vadd.f32 0.0, %v2420
    %v2422 = vpop.f32.mrf.mxu0
    %2423 = vmatprep.mubr.f32.mxu0 0.0
    %2424 = vmatmul.mubr.f32.gmra.mxu0 %v2234
    %v2425 = vpop.f32.mrf.mxu0
    %v2426 = vadd.f32 0.0, %v2425
    %v2427 = vpop.f32.mrf.mxu0
    %2428 = vmatprep.mubr.f32.mxu0 0.0
    %2429 = vmatmul.mubr.f32.gmra.mxu0 %v2237
    %v2430 = vpop.f32.mrf.mxu0
    %v2431 = vadd.f32 0.0, %v2430
    %v2432 = vpop.f32.mrf.mxu0
    %2433 = vmatprep.mubr.f32.mxu0 0.0
    %2434 = vmatmul.mubr.f32.gmra.mxu0 %v2240
    %v2435 = vpop.f32.mrf.mxu0
    %v2436 = vadd.f32 0.0, %v2435
    %v2437 = vpop.f32.mrf.mxu0
    %2438 = vmatprep.mubr.f32.mxu0 0.0
    %2439 = vmatmul.mubr.f32.gmra.mxu0 %v2243
    %v2440 = vpop.f32.mrf.mxu0
    %v2441 = vadd.f32 0.0, %v2440
    %v2442 = vpop.f32.mrf.mxu0
    %2443 = vmatprep.mubr.f32.mxu0 0.0
    %2444 = vmatmul.mubr.f32.gmra.mxu0 %v2246
    %v2445 = vpop.f32.mrf.mxu0
    %v2446 = vadd.f32 0.0, %v2445
    %v2447 = vpop.f32.mrf.mxu0
    %2448 = vmatprep.mubr.f32.mxu0 0.0
    %2449 = vmatmul.mubr.f32.gmra.mxu0 %v2249
    %v2450 = vpop.f32.mrf.mxu0
    %v2451 = vadd.f32 0.0, %v2450
    %v2452 = vpop.f32.mrf.mxu0
    %2453 = vmatprep.mubr.f32.mxu0 0.0
    %2454 = vmatmul.mubr.f32.gmra.mxu0 %v2252
    %v2455 = vpop.f32.mrf.mxu0
    %v2456 = vadd.f32 0.0, %v2455
    %v2457 = vpop.f32.mrf.mxu0
    %2458 = vmatprep.mubr.f32.mxu0 0.0
    %2459 = vmatmul.mubr.f32.gmra.mxu0 %v2255
    %v2460 = vpop.f32.mrf.mxu0
    %v2461 = vadd.f32 0.0, %v2460
    %v2462 = vpop.f32.mrf.mxu0
    %2463 = vmatprep.mubr.f32.mxu0 0.0
    %2464 = vmatmul.mubr.f32.gmra.mxu0 %v2258
    %v2465 = vpop.f32.mrf.mxu0
    %v2466 = vadd.f32 0.0, %v2465
    %v2467 = vpop.f32.mrf.mxu0
    %2468 = vmatprep.mubr.f32.mxu0 0.0
    %2469 = vmatmul.mubr.f32.gmra.mxu0 %v2261
    %v2470 = vpop.f32.mrf.mxu0
    %v2471 = vadd.f32 0.0, %v2470
    %v2472 = vpop.f32.mrf.mxu0
    %2473 = vmatprep.mubr.f32.mxu0 0.0
    %2474 = vmatmul.mubr.f32.gmra.mxu0 %v2264
    %v2475 = vpop.f32.mrf.mxu0
    %v2476 = vadd.f32 0.0, %v2475
    %v2477 = vpop.f32.mrf.mxu0
    %2478 = vmatprep.mubr.f32.mxu0 0.0
    %2479 = vmatmul.mubr.f32.gmra.mxu0 %v2267
    %v2480 = vpop.f32.mrf.mxu0
    %v2481 = vadd.f32 0.0, %v2480
    %v2482 = vpop.f32.mrf.mxu0
    %2483 = vmatprep.mubr.f32.mxu0 0.0
    %2484 = vmatmul.mubr.f32.gmra.mxu0 %v2270
    %v2485 = vpop.f32.mrf.mxu0
    %v2486 = vadd.f32 0.0, %v2485
    %v2487 = vpop.f32.mrf.mxu0
    %2488 = vmatprep.mubr.f32.mxu0 0.0
    %2489 = vmatmul.mubr.f32.gmra.mxu0 %v2273
    %v2490 = vpop.f32.mrf.mxu0
    %v2491 = vadd.f32 0.0, %v2490
    %v2492 = vpop.f32.mrf.mxu0
    %2493 = vmatprep.mubr.f32.mxu0 0.0
    %2494 = vmatmul.mubr.f32.gmra.mxu0 %v2276
    %v2495 = vpop.f32.mrf.mxu0
    %v2496 = vadd.f32 0.0, %v2495
    %v2497 = vpop.f32.mrf.mxu0
    %2498 = vmatprep.mubr.f32.mxu0 0.0
    %2499 = vmatmul.mubr.f32.gmra.mxu0 %v2279
    %v2500 = vpop.f32.mrf.mxu0
    %v2501 = vadd.f32 0.0, %v2500
    %v2502 = vpop.f32.mrf.mxu0
    %2503 = vmatprep.mubr.f32.mxu0 0.0
    %2504 = vmatmul.mubr.f32.gmra.mxu0 %v2282
    %v2505 = vpop.f32.mrf.mxu0
    %v2506 = vadd.f32 0.0, %v2505
    %v2507 = vpop.f32.mrf.mxu0
    %2508 = vdwg.mxu0
    %v2509 = vld [vmem:[%s5] sm:$0x1]
    %v2510 = vld [vmem:[%s6] sm:$0x1]
    %v2511 = vsel %vm992, %v2351, 0.0
    %v2512 = vsel %vm992, %v2356, 0.0
    %v2513 = vadd.f32 %v2511, %v2512
    %v2514 = vsel %vm992, %v2361, 0.0
    %v2515 = vadd.f32 %v2513, %v2514
    %v2516 = vsel %vm992, %v2366, 0.0
    %v2517 = vadd.f32 %v2515, %v2516
    %v2518 = vsel %vm992, %v2371, 0.0
    %v2519 = vadd.f32 %v2517, %v2518
    %v2520 = vsel %vm992, %v2376, 0.0
    %v2521 = vadd.f32 %v2519, %v2520
    %v2522 = vsel %vm992, %v2381, 0.0
    %v2523 = vadd.f32 %v2521, %v2522
    %v2524 = vsel %vm992, %v2386, 0.0
    %v2525 = vadd.f32 %v2523, %v2524
    %v2526 = vsel %vm992, %v2391, 0.0
    %v2527 = vadd.f32 %v2525, %v2526
    %v2528 = vsel %vm992, %v2396, 0.0
    %v2529 = vadd.f32 %v2527, %v2528
    %v2530 = vsel %vm992, %v2401, 0.0
    %v2531 = vadd.f32 %v2529, %v2530
    %v2532 = vsel %vm992, %v2406, 0.0
    %v2533 = vadd.f32 %v2531, %v2532
    %v2534 = vsel %vm992, %v2411, 0.0
    %v2535 = vadd.f32 %v2533, %v2534
    %v2536 = vsel %vm992, %v2416, 0.0
    %v2537 = vadd.f32 %v2535, %v2536
    %v2538 = vsel %vm992, %v2421, 0.0
    %v2539 = vadd.f32 %v2537, %v2538
    %v2540 = vsel %vm992, %v2426, 0.0
    %v2541 = vadd.f32 %v2539, %v2540
    %v2542 = vsel %vm992, %v2431, 0.0
    %v2543 = vadd.f32 %v2541, %v2542
    %v2544 = vsel %vm992, %v2436, 0.0
    %v2545 = vadd.f32 %v2543, %v2544
    %v2546 = vsel %vm992, %v2441, 0.0
    %v2547 = vadd.f32 %v2545, %v2546
    %v2548 = vsel %vm992, %v2446, 0.0
    %v2549 = vadd.f32 %v2547, %v2548
    %v2550 = vsel %vm992, %v2451, 0.0
    %v2551 = vadd.f32 %v2549, %v2550
    %v2552 = vsel %vm992, %v2456, 0.0
    %v2553 = vadd.f32 %v2551, %v2552
    %v2554 = vsel %vm992, %v2461, 0.0
    %v2555 = vadd.f32 %v2553, %v2554
    %v2556 = vsel %vm992, %v2466, 0.0
    %v2557 = vadd.f32 %v2555, %v2556
    %v2558 = vsel %vm992, %v2471, 0.0
    %v2559 = vadd.f32 %v2557, %v2558
    %v2560 = vsel %vm992, %v2476, 0.0
    %v2561 = vadd.f32 %v2559, %v2560
    %v2562 = vsel %vm992, %v2481, 0.0
    %v2563 = vadd.f32 %v2561, %v2562
    %v2564 = vsel %vm992, %v2486, 0.0
    %v2565 = vadd.f32 %v2563, %v2564
    %v2566 = vsel %vm992, %v2491, 0.0
    %v2567 = vadd.f32 %v2565, %v2566
    %v2568 = vsel %vm992, %v2496, 0.0
    %v2569 = vadd.f32 %v2567, %v2568
    %v2570 = vsel %vm992, %v2501, 0.0
    %v2571 = vadd.f32 %v2569, %v2570
    %v2572 = vsel %vm992, %v2506, 0.0
    %v2573 = vadd.f32 %v2571, %v2572
    %v2574 = vrot.slane %v2573, 4
    %v2575 = vadd.f32 %v2573, %v2574
    %v2576 = vrot.slane %v2575, 2
    %v2577 = vadd.f32 %v2575, %v2576
    %v2578 = vrot.slane %v2577, 1
    %v2579 = vadd.f32 %v2577, %v2578
    %v2580 = vmul.f32 %v2351, %v2351
    %v2581 = vmul.f32 %v2356, %v2356
    %v2582 = vmul.f32 %v2361, %v2361
    %v2583 = vmul.f32 %v2366, %v2366
    %v2584 = vmul.f32 %v2371, %v2371
    %v2585 = vmul.f32 %v2376, %v2376
    %v2586 = vmul.f32 %v2381, %v2381
    %v2587 = vmul.f32 %v2386, %v2386
    %v2588 = vmul.f32 %v2391, %v2391
    %v2589 = vmul.f32 %v2396, %v2396
    %v2590 = vmul.f32 %v2401, %v2401
    %v2591 = vmul.f32 %v2406, %v2406
    %v2592 = vmul.f32 %v2411, %v2411
    %v2593 = vmul.f32 %v2416, %v2416
    %v2594 = vmul.f32 %v2421, %v2421
    %v2595 = vmul.f32 %v2426, %v2426
    %v2596 = vmul.f32 %v2431, %v2431
    %v2597 = vmul.f32 %v2436, %v2436
    %v2598 = vmul.f32 %v2441, %v2441
    %v2599 = vmul.f32 %v2446, %v2446
    %v2600 = vmul.f32 %v2451, %v2451
    %v2601 = vmul.f32 %v2456, %v2456
    %v2602 = vmul.f32 %v2461, %v2461
    %v2603 = vmul.f32 %v2466, %v2466
    %v2604 = vmul.f32 %v2471, %v2471
    %v2605 = vmul.f32 %v2476, %v2476
    %v2606 = vmul.f32 %v2481, %v2481
    %v2607 = vmul.f32 %v2486, %v2486
    %v2608 = vmul.f32 %v2491, %v2491
    %v2609 = vmul.f32 %v2496, %v2496
    %v2610 = vmul.f32 %v2501, %v2501
    %v2611 = vmul.f32 %v2506, %v2506
    %v2612 = vsel %vm992, %v2580, 0.0
    %v2613 = vsel %vm992, %v2581, 0.0
    %v2614 = vadd.f32 %v2612, %v2613
    %v2615 = vsel %vm992, %v2582, 0.0
    %v2616 = vadd.f32 %v2614, %v2615
    %v2617 = vsel %vm992, %v2583, 0.0
    %v2618 = vadd.f32 %v2616, %v2617
    %v2619 = vsel %vm992, %v2584, 0.0
    %v2620 = vadd.f32 %v2618, %v2619
    %v2621 = vsel %vm992, %v2585, 0.0
    %v2622 = vadd.f32 %v2620, %v2621
    %v2623 = vsel %vm992, %v2586, 0.0
    %v2624 = vadd.f32 %v2622, %v2623
    %v2625 = vsel %vm992, %v2587, 0.0
    %v2626 = vadd.f32 %v2624, %v2625
    %v2627 = vsel %vm992, %v2588, 0.0
    %v2628 = vadd.f32 %v2626, %v2627
    %v2629 = vsel %vm992, %v2589, 0.0
    %v2630 = vadd.f32 %v2628, %v2629
    %v2631 = vsel %vm992, %v2590, 0.0
    %v2632 = vadd.f32 %v2630, %v2631
    %v2633 = vsel %vm992, %v2591, 0.0
    %v2634 = vadd.f32 %v2632, %v2633
    %v2635 = vsel %vm992, %v2592, 0.0
    %v2636 = vadd.f32 %v2634, %v2635
    %v2637 = vsel %vm992, %v2593, 0.0
    %v2638 = vadd.f32 %v2636, %v2637
    %v2639 = vsel %vm992, %v2594, 0.0
    %v2640 = vadd.f32 %v2638, %v2639
    %v2641 = vsel %vm992, %v2595, 0.0
    %v2642 = vadd.f32 %v2640, %v2641
    %v2643 = vsel %vm992, %v2596, 0.0
    %v2644 = vadd.f32 %v2642, %v2643
    %v2645 = vsel %vm992, %v2597, 0.0
    %v2646 = vadd.f32 %v2644, %v2645
    %v2647 = vsel %vm992, %v2598, 0.0
    %v2648 = vadd.f32 %v2646, %v2647
    %v2649 = vsel %vm992, %v2599, 0.0
    %v2650 = vadd.f32 %v2648, %v2649
    %v2651 = vsel %vm992, %v2600, 0.0
    %v2652 = vadd.f32 %v2650, %v2651
    %v2653 = vsel %vm992, %v2601, 0.0
    %v2654 = vadd.f32 %v2652, %v2653
    %v2655 = vsel %vm992, %v2602, 0.0
    %v2656 = vadd.f32 %v2654, %v2655
    %v2657 = vsel %vm992, %v2603, 0.0
    %v2658 = vadd.f32 %v2656, %v2657
    %v2659 = vsel %vm992, %v2604, 0.0
    %v2660 = vadd.f32 %v2658, %v2659
    %v2661 = vsel %vm992, %v2605, 0.0
    %v2662 = vadd.f32 %v2660, %v2661
    %v2663 = vsel %vm992, %v2606, 0.0
    %v2664 = vadd.f32 %v2662, %v2663
    %v2665 = vsel %vm992, %v2607, 0.0
    %v2666 = vadd.f32 %v2664, %v2665
    %v2667 = vsel %vm992, %v2608, 0.0
    %v2668 = vadd.f32 %v2666, %v2667
    %v2669 = vsel %vm992, %v2609, 0.0
    %v2670 = vadd.f32 %v2668, %v2669
    %v2671 = vsel %vm992, %v2610, 0.0
    %v2672 = vadd.f32 %v2670, %v2671
    %v2673 = vsel %vm992, %v2611, 0.0
    %v2674 = vadd.f32 %v2672, %v2673
    %v2675 = vrot.slane %v2674, 4
    %v2676 = vadd.f32 %v2674, %v2675
    %v2677 = vrot.slane %v2676, 2
    %v2678 = vadd.f32 %v2676, %v2677
    %v2679 = vrot.slane %v2678, 1
    %v2680 = vadd.f32 %v2678, %v2679
    %v2681 = vmul.f32 %v2579, 0.00390625
    %v2682 = vmul.f32 %v2680, 0.00390625
    %v2683 = vmul.f32 %v2681, %v2681
    %v2684 = vsub.f32 %v2682, %v2683
    %v2685 = vmax.f32 %v2684, 0.0
    %v2686 = vadd.f32 %v2685, 1e-05
    %v2687 = vrsqrt.pop %v2686
    %v2688 = vmul.f32 %v2509, %v2687
    %v2689 = vmul.f32 %v2681, %v2688
    %v2690 = vsub.f32 %v2510, %v2689
    %v2692 = vlaneseq
    %v2693 = vshrl.u32 %v2692, 7
    %v2694 = vsub.s32 0, %v2693
    %v2695 = vrot.slane %v2688, %v2694
    %v2697 = vmul.f32 %v2351, %v2695
    %v2698 = vmul.f32 %v2356, %v2695
    %v2699 = vmul.f32 %v2361, %v2695
    %v2700 = vmul.f32 %v2366, %v2695
    %v2701 = vmul.f32 %v2371, %v2695
    %v2702 = vmul.f32 %v2376, %v2695
    %v2703 = vmul.f32 %v2381, %v2695
    %v2704 = vmul.f32 %v2386, %v2695
    %v2705 = vmul.f32 %v2391, %v2695
    %v2706 = vmul.f32 %v2396, %v2695
    %v2707 = vmul.f32 %v2401, %v2695
    %v2708 = vmul.f32 %v2406, %v2695
    %v2709 = vmul.f32 %v2411, %v2695
    %v2710 = vmul.f32 %v2416, %v2695
    %v2711 = vmul.f32 %v2421, %v2695
    %v2712 = vmul.f32 %v2426, %v2695
    %v2713 = vmul.f32 %v2431, %v2695
    %v2714 = vmul.f32 %v2436, %v2695
    %v2715 = vmul.f32 %v2441, %v2695
    %v2716 = vmul.f32 %v2446, %v2695
    %v2717 = vmul.f32 %v2451, %v2695
    %v2718 = vmul.f32 %v2456, %v2695
    %v2719 = vmul.f32 %v2461, %v2695
    %v2720 = vmul.f32 %v2466, %v2695
    %v2721 = vmul.f32 %v2471, %v2695
    %v2722 = vmul.f32 %v2476, %v2695
    %v2723 = vmul.f32 %v2481, %v2695
    %v2724 = vmul.f32 %v2486, %v2695
    %v2725 = vmul.f32 %v2491, %v2695
    %v2726 = vmul.f32 %v2496, %v2695
    %v2727 = vmul.f32 %v2501, %v2695
    %v2728 = vmul.f32 %v2506, %v2695
    %v2730 = vlaneseq
    %v2731 = vshrl.u32 %v2730, 7
    %v2732 = vsub.s32 0, %v2731
    %v2733 = vrot.slane %v2690, %v2732
    %v2735 = vadd.f32 %v2697, %v2733
    %v2736 = vadd.f32 %v2698, %v2733
    %v2737 = vadd.f32 %v2699, %v2733
    %v2738 = vadd.f32 %v2700, %v2733
    %v2739 = vadd.f32 %v2701, %v2733
    %v2740 = vadd.f32 %v2702, %v2733
    %v2741 = vadd.f32 %v2703, %v2733
    %v2742 = vadd.f32 %v2704, %v2733
    %v2743 = vadd.f32 %v2705, %v2733
    %v2744 = vadd.f32 %v2706, %v2733
    %v2745 = vadd.f32 %v2707, %v2733
    %v2746 = vadd.f32 %v2708, %v2733
    %v2747 = vadd.f32 %v2709, %v2733
    %v2748 = vadd.f32 %v2710, %v2733
    %v2749 = vadd.f32 %v2711, %v2733
    %v2750 = vadd.f32 %v2712, %v2733
    %v2751 = vadd.f32 %v2713, %v2733
    %v2752 = vadd.f32 %v2714, %v2733
    %v2753 = vadd.f32 %v2715, %v2733
    %v2754 = vadd.f32 %v2716, %v2733
    %v2755 = vadd.f32 %v2717, %v2733
    %v2756 = vadd.f32 %v2718, %v2733
    %v2757 = vadd.f32 %v2719, %v2733
    %v2758 = vadd.f32 %v2720, %v2733
    %v2759 = vadd.f32 %v2721, %v2733
    %v2760 = vadd.f32 %v2722, %v2733
    %v2761 = vadd.f32 %v2723, %v2733
    %v2762 = vadd.f32 %v2724, %v2733
    %v2763 = vadd.f32 %v2725, %v2733
    %v2764 = vadd.f32 %v2726, %v2733
    %v2765 = vadd.f32 %v2727, %v2733
    %v2766 = vadd.f32 %v2728, %v2733
    %v2767 = vadd.f32 %v2735, %v45
    %v2768 = vadd.f32 %v2736, %v46
    %v2769 = vadd.f32 %v2737, %v47
    %v2770 = vadd.f32 %v2738, %v48
    %v2771 = vadd.f32 %v2739, %v49
    %v2772 = vadd.f32 %v2740, %v50
    %v2773 = vadd.f32 %v2741, %v51
    %v2774 = vadd.f32 %v2742, %v52
    %v2775 = vadd.f32 %v2743, %v53
    %v2776 = vadd.f32 %v2744, %v54
    %v2777 = vadd.f32 %v2745, %v55
    %v2778 = vadd.f32 %v2746, %v56
    %v2779 = vadd.f32 %v2747, %v57
    %v2780 = vadd.f32 %v2748, %v58
    %v2781 = vadd.f32 %v2749, %v59
    %v2782 = vadd.f32 %v2750, %v60
    %v2783 = vadd.f32 %v2751, %v77
    %v2784 = vadd.f32 %v2752, %v78
    %v2785 = vadd.f32 %v2753, %v79
    %v2786 = vadd.f32 %v2754, %v80
    %v2787 = vadd.f32 %v2755, %v81
    %v2788 = vadd.f32 %v2756, %v82
    %v2789 = vadd.f32 %v2757, %v83
    %v2790 = vadd.f32 %v2758, %v84
    %v2791 = vadd.f32 %v2759, %v85
    %v2792 = vadd.f32 %v2760, %v86
    %v2793 = vadd.f32 %v2761, %v87
    %v2794 = vadd.f32 %v2762, %v88
    %v2795 = vadd.f32 %v2763, %v89
    %v2796 = vadd.f32 %v2764, %v90
    %v2797 = vadd.f32 %v2765, %v91
    %v2798 = vadd.f32 %v2766, %v92
    %v2799 = vmax.f32 %v2767, 0.0
    %v2800 = vmax.f32 %v2768, 0.0
    %v2801 = vmax.f32 %v2769, 0.0
    %v2802 = vmax.f32 %v2770, 0.0
    %v2803 = vmax.f32 %v2771, 0.0
    %v2804 = vmax.f32 %v2772, 0.0
    %v2805 = vmax.f32 %v2773, 0.0
    %v2806 = vmax.f32 %v2774, 0.0
    %v2807 = vmax.f32 %v2775, 0.0
    %v2808 = vmax.f32 %v2776, 0.0
    %v2809 = vmax.f32 %v2777, 0.0
    %v2810 = vmax.f32 %v2778, 0.0
    %v2811 = vmax.f32 %v2779, 0.0
    %v2812 = vmax.f32 %v2780, 0.0
    %v2813 = vmax.f32 %v2781, 0.0
    %v2814 = vmax.f32 %v2782, 0.0
    %v2815 = vmax.f32 %v2783, 0.0
    %v2816 = vmax.f32 %v2784, 0.0
    %v2817 = vmax.f32 %v2785, 0.0
    %v2818 = vmax.f32 %v2786, 0.0
    %v2819 = vmax.f32 %v2787, 0.0
    %v2820 = vmax.f32 %v2788, 0.0
    %v2821 = vmax.f32 %v2789, 0.0
    %v2822 = vmax.f32 %v2790, 0.0
    %v2823 = vmax.f32 %v2791, 0.0
    %v2824 = vmax.f32 %v2792, 0.0
    %v2825 = vmax.f32 %v2793, 0.0
    %v2826 = vmax.f32 %v2794, 0.0
    %v2827 = vmax.f32 %v2795, 0.0
    %v2828 = vmax.f32 %v2796, 0.0
    %v2829 = vmax.f32 %v2797, 0.0
    %v2830 = vmax.f32 %v2798, 0.0
    %2831 = vxpose.xlu0.b32.start [1/16] %v2799, 128
    %2832 = vxpose.xlu0.b32.cont [2/16] %v2800, 128
    %2833 = vxpose.xlu0.b32.cont [3/16] %v2801, 128
    %2834 = vxpose.xlu0.b32.cont [4/16] %v2802, 128
    %2835 = vxpose.xlu0.b32.cont [5/16] %v2803, 128
    %2836 = vxpose.xlu0.b32.cont [6/16] %v2804, 128
    %2837 = vxpose.xlu0.b32.cont [7/16] %v2805, 128
    %2838 = vxpose.xlu0.b32.cont [8/16] %v2806, 128
    %2839 = vxpose.xlu0.b32.cont [9/16] %v2807, 128
    %2840 = vxpose.xlu0.b32.cont [10/16] %v2808, 128
    %2841 = vxpose.xlu0.b32.cont [11/16] %v2809, 128
    %2842 = vxpose.xlu0.b32.cont [12/16] %v2810, 128
    %2843 = vxpose.xlu0.b32.cont [13/16] %v2811, 128
    %2844 = vxpose.xlu0.b32.cont [14/16] %v2812, 128
    %2845 = vxpose.xlu0.b32.cont [15/16] %v2813, 128
    %2846 = vxpose.xlu0.b32.end [16/16] %v2814, 128
    %v2847 = vpop.trf.xlu0
    %v2848 = vpop.trf.xlu0
    %v2849 = vpop.trf.xlu0
    %v2850 = vpop.trf.xlu0
    %v2851 = vpop.trf.xlu0
    %v2852 = vpop.trf.xlu0
    %v2853 = vpop.trf.xlu0
    %v2854 = vpop.trf.xlu0
    %v2855 = vpop.trf.xlu0
    %v2856 = vpop.trf.xlu0
    %v2857 = vpop.trf.xlu0
    %v2858 = vpop.trf.xlu0
    %v2859 = vpop.trf.xlu0
    %v2860 = vpop.trf.xlu0
    %v2861 = vpop.trf.xlu0
    %v2862 = vpop.trf.xlu0
    %2863 = vxpose.xlu0.b32.start [1/16] %v2815, 128
    %2864 = vxpose.xlu0.b32.cont [2/16] %v2816, 128
    %2865 = vxpose.xlu0.b32.cont [3/16] %v2817, 128
    %2866 = vxpose.xlu0.b32.cont [4/16] %v2818, 128
    %2867 = vxpose.xlu0.b32.cont [5/16] %v2819, 128
    %2868 = vxpose.xlu0.b32.cont [6/16] %v2820, 128
    %2869 = vxpose.xlu0.b32.cont [7/16] %v2821, 128
    %2870 = vxpose.xlu0.b32.cont [8/16] %v2822, 128
    %2871 = vxpose.xlu0.b32.cont [9/16] %v2823, 128
    %2872 = vxpose.xlu0.b32.cont [10/16] %v2824, 128
    %2873 = vxpose.xlu0.b32.cont [11/16] %v2825, 128
    %2874 = vxpose.xlu0.b32.cont [12/16] %v2826, 128
    %2875 = vxpose.xlu0.b32.cont [13/16] %v2827, 128
    %2876 = vxpose.xlu0.b32.cont [14/16] %v2828, 128
    %2877 = vxpose.xlu0.b32.cont [15/16] %v2829, 128
    %2878 = vxpose.xlu0.b32.end [16/16] %v2830, 128
    %v2879 = vpop.trf.xlu0
    %v2880 = vpop.trf.xlu0
    %v2881 = vpop.trf.xlu0
    %v2882 = vpop.trf.xlu0
    %v2883 = vpop.trf.xlu0
    %v2884 = vpop.trf.xlu0
    %v2885 = vpop.trf.xlu0
    %v2886 = vpop.trf.xlu0
    %v2887 = vpop.trf.xlu0
    %v2888 = vpop.trf.xlu0
    %v2889 = vpop.trf.xlu0
    %v2890 = vpop.trf.xlu0
    %v2891 = vpop.trf.xlu0
    %v2892 = vpop.trf.xlu0
    %v2893 = vpop.trf.xlu0
    %v2894 = vpop.trf.xlu0
    %2895 = vst [vmem:[#allocation2] sm:$0xff] %v2847
    %2896 = vst [vmem:[#allocation2 + $0x8] sm:$0xff] %v2879
    // Predicated region
    $region30: #{tpu_custom_call.1} parent=1 // pred_check
      _
    $region31: #{tpu_custom_call.1} parent=1 // pred_check_branch
      %2898 = sbr.rel (0) target = $region33
    $region32: #{tpu_custom_call.1} parent=1 // pred_region
      %s2900 = ssub.s32 256, 256
      %2901 = vsyncadd [#allocation3], %s2900
      %s2902 = sshll.u32 [#allocation2], 4
      %s2903 = int_to_ptr.vmem [resolvable:$true] %s2902
      %2908 = dma.vmem_to_hbm [thread:$0]  %s2903, 256, %s7, [#allocation3], 128, 128, 8
    $region33: #{tpu_custom_call.1} parent=1 // pred_fallthru
      _
    // Predicated region
    $region34: #{tpu_custom_call.1} parent=1 // pred_check
      _
    $region35: #{tpu_custom_call.1} parent=1 // pred_check_branch
      %2910 = sbr.rel (0) target = $region37
    $region36: #{tpu_custom_call.1} parent=1 // pred_region
      %2911 = dma.done [#allocation3], 256
    $region37: #{tpu_custom_call.1} parent=1 // pred_fallthru
      _
    %2912 = vsyncpa [#allocation3], 1

</llo_original>
